<compile_context>
chip_gen: v7x
topology: tpu7x:2x2x1
jax: 0.10.0
libtpu: 0.0.40
codegen_flags: <defaults>
</compile_context>

<pallas_src>
import functools

import jax
import jax.numpy as jnp
from jax import lax
from jax.experimental import pallas as pl
from jax.experimental.pallas import tpu as pltpu

_LANES = 128
_SUBLANES = 8
_SLICE_ROWS = 64          # inner-loop sublane-group slice: (64,128) f32 = 8 vregs / array
_MAX_TILE_ROWS = 2048     # (2048,128) f32 = 1 MiB per input block (8 MiB double-buffered)
_SMALL_N = 1 << 16        # below this, a single fused XLA reduction beats Pallas overhead


# ----------------------------------------------------------------------------- kernel ---
def _ionmob_loss_kernel(ccs_o_ref, ccs_t_ref, std_o_ref, std_t_ref, acc_ref,
                        *, use_mse: bool):
    """Accumulate per-lane partial sums of (ccs err, masked std err, mask count).

    acc_ref: (3, 8, 128) float32, resident across the (single, 'arbitrary') grid axis.
    """
    @pl.when(pl.program_id(0) == 0)
    def _():
        acc_ref[...] = jnp.zeros_like(acc_ref)

    tile_rows = ccs_o_ref.shape[0]
    n_slices = tile_rows // _SLICE_ROWS  # static; tile_rows is a multiple of _SLICE_ROWS

    def fold(x):
        # (64,128) -> (8,8,128); summing the leading axis is pure VPU vreg adds
        # (no cross-lane / XLU work in the hot loop).
        return jnp.sum(x.reshape(_SLICE_ROWS // _SUBLANES, _SUBLANES, _LANES), axis=0)

    def body(i, carry):
        acc_ccs, acc_std, acc_cnt = carry
        r0 = pl.multiple_of(i * _SLICE_ROWS, _SLICE_ROWS)
        sl = pl.ds(r0, _SLICE_ROWS)

        ccs_o = ccs_o_ref[sl, :].astype(jnp.float32)
        ccs_t = ccs_t_ref[sl, :].astype(jnp.float32)
        std_o = std_o_ref[sl, :].astype(jnp.float32)
        std_t = std_t_ref[sl, :].astype(jnp.float32)

        d_ccs = ccs_o - ccs_t
        err_ccs = d_ccs * d_ccs if use_mse else jnp.abs(d_ccs)

        mask = std_t != -1.0
        d_std = std_o - std_t
        err_std = d_std * d_std if use_mse else jnp.abs(d_std)
        err_std = jnp.where(mask, err_std, 0.0)
        cnt = mask.astype(jnp.float32)

        return (acc_ccs + fold(err_ccs),
                acc_std + fold(err_std),
                acc_cnt + fold(cnt))

    zero = jnp.zeros((_SUBLANES, _LANES), jnp.float32)
    acc_ccs, acc_std, acc_cnt = lax.fori_loop(
        0, n_slices, body, (zero, zero, zero), unroll=True)

    acc_ref[0] += acc_ccs
    acc_ref[1] += acc_std
    acc_ref[2] += acc_cnt


# --------------------------------------------------------------------------- wrapper ----
def _partial_sums(ccs_o, ccs_t, std_o, std_t, use_mse: bool):
    """Pure-JAX partial sums (small-N fast path and the < one-tile tail epilogue)."""
    ccs_o = ccs_o.astype(jnp.float32)
    ccs_t = ccs_t.astype(jnp.float32)
    std_o = std_o.astype(jnp.float32)
    std_t = std_t.astype(jnp.float32)

    d_ccs = ccs_o - ccs_t
    err_ccs = d_ccs * d_ccs if use_mse else jnp.abs(d_ccs)

    mask = std_t != -1.0
    d_std = std_o - std_t
    err_std = d_std * d_std if use_mse else jnp.abs(d_std)
    err_std = jnp.where(mask, err_std, 0.0)

    return (jnp.sum(err_ccs), jnp.sum(err_std), jnp.sum(mask.astype(jnp.float32)))


def _combine(sum_ccs, sum_std, cnt, n):
    loss_ccs = sum_ccs / jnp.float32(n)
    loss_std = jnp.where(cnt > 0.0, sum_std / jnp.maximum(cnt, 1.0),
                         jnp.float32(0.0))
    return loss_ccs + loss_std


def masked_ionmob_loss(outputs, targets, use_mse: bool = True):
    """Pallas TPU implementation of MaskedIonmobLoss.forward."""
    ccs_out, ccs_std_out = outputs
    ccs_tgt, ccs_std_tgt = targets

    ccs_o = ccs_out.reshape(-1)
    ccs_t = ccs_tgt.reshape(-1)
    std_o = ccs_std_out.reshape(-1)
    std_t = ccs_std_tgt.reshape(-1)
    n = ccs_o.shape[0]

    # --- small-N fast path: one fused XLA reduction beats the pallas_call overhead ---
    if n < _SMALL_N:
        s_ccs, s_std, cnt = _partial_sums(ccs_o, ccs_t, std_o, std_t, use_mse)
        return _combine(s_ccs, s_std, cnt, n)

    rows = n // _LANES
    tile_rows = min(_MAX_TILE_ROWS, (rows // _SLICE_ROWS) * _SLICE_ROWS)
    if tile_rows == 0:  # unreachable given _SMALL_N, kept for safety
        s_ccs, s_std, cnt = _partial_sums(ccs_o, ccs_t, std_o, std_t, use_mse)
        return _combine(s_ccs, s_std, cnt, n)

    num_tiles = rows // tile_rows
    kernel_rows = num_tiles * tile_rows
    kernel_n = kernel_rows * _LANES

    def slab(x):
        # Offset-0 prefix slice + reshape: no pad, no full-array rewrite.
        return x[:kernel_n].reshape(kernel_rows, _LANES)

    in_spec = pl.BlockSpec((tile_rows, _LANES), lambda i: (i, 0))
    out_spec = pl.BlockSpec((3, _SUBLANES, _LANES), lambda i: (0, 0, 0))

    acc = pl.pallas_call(
        functools.partial(_ionmob_loss_kernel, use_mse=use_mse),
        out_shape=jax.ShapeDtypeStruct((3, _SUBLANES, _LANES), jnp.float32),
        grid_spec=pltpu.PrefetchScalarGridSpec(
            num_scalar_prefetch=0,
            grid=(num_tiles,),
            in_specs=[in_spec, in_spec, in_spec, in_spec],
            out_specs=out_spec,
        ),
        compiler_params=pltpu.CompilerParams(
            dimension_semantics=("arbitrary",)),
    )(slab(ccs_o), slab(ccs_t), slab(std_o), slab(std_t))

    # Tiny cross-lane reduction of the (3,8,128) accumulator in plain JAX.
    sums = jnp.sum(acc, axis=(1, 2))
    sum_ccs, sum_std, cnt = sums[0], sums[1], sums[2]

    # Ragged tail (< one tile + sub-128 remainder) reduced by a small fused epilogue.
    if kernel_n < n:
        t_ccs, t_std, t_cnt = _partial_sums(
            ccs_o[kernel_n:], ccs_t[kernel_n:], std_o[kernel_n:], std_t[kernel_n:],
            use_mse)
        sum_ccs = sum_ccs + t_ccs
        sum_std = sum_std + t_std
        cnt = cnt + t_cnt

    return _combine(sum_ccs, sum_std, cnt, n)


# -------------------------------------------------------------------------- reference ---
def _reference_loss(outputs, targets, use_mse: bool = True):
    ccs_out, ccs_std_out = outputs
    ccs_tgt, ccs_std_tgt = targets
    err = (lambda a, b: (a - b) ** 2) if use_mse else (lambda a, b: jnp.abs(a - b))
    loss_ccs = jnp.mean(err(ccs_out, ccs_tgt))
    mask = ccs_std_tgt != -1.0
    cnt = jnp.sum(mask)
    masked_err = jnp.where(mask, err(ccs_std_out, ccs_std_tgt), 0.0)
    loss_std = jnp.where(cnt > 0, jnp.sum(masked_err) / jnp.maximum(cnt, 1), 0.0)
    return loss_ccs + loss_std


if __name__ == "__main__":
    key = jax.random.PRNGKey(0)

    # ---- Small, realistic case: per-sample CCS scalars of shape (batch, 1) -----------
    # (goes through the fused pure-JAX fast path)
    k1, k2, k3, k4 = jax.random.split(key, 4)
    batch = 300
    ccs_out = jax.random.normal(k1, (batch, 1), dtype=jnp.float32) * 10.0 + 400.0
    ccs_tgt = jax.random.normal(k2, (batch, 1), dtype=jnp.float32) * 10.0 + 400.0
    ccs_std_out = jax.random.uniform(k3, (batch, 1), dtype=jnp.float32) * 5.0
    ccs_std_tgt = jax.random.uniform(k4, (batch, 1), dtype=jnp.float32) * 5.0
    missing = (jnp.arange(batch) % 3 == 0)[:, None]
    ccs_std_tgt = jnp.where(missing, -1.0, ccs_std_tgt)

    outputs = (ccs_out, ccs_std_out)
    targets = (ccs_tgt, ccs_std_tgt)
    for mse in (True, False):
        got = jax.block_until_ready(masked_ionmob_loss(outputs, targets, use_mse=mse))
        ref = _reference_loss(outputs, targets, use_mse=mse)
        assert jnp.allclose(got, ref, rtol=1e-5, atol=1e-5), (mse, got, ref)

    # ---- All-masked case (mask.any() == False branch) ---------------------------------
    small_out = (ccs_out[:16], ccs_std_out[:16])
    small_tgt = (ccs_tgt[:16], jnp.full((16, 1), -1.0, dtype=jnp.float32))
    got = jax.block_until_ready(masked_ionmob_loss(small_out, small_tgt))
    ref = _reference_loss(small_out, small_tgt)
    assert jnp.allclose(got, ref, rtol=1e-5, atol=1e-5), (got, ref)

    # ---- Pallas path: ragged size (single tile + JAX tail), MSE and MAE ---------------
    k5, k6, k7, k8 = jax.random.split(jax.random.PRNGKey(1), 4)
    n1 = 100_003
    a_o = jax.random.normal(k5, (n1,), dtype=jnp.float32) * 10.0 + 400.0
    a_t = jax.random.normal(k6, (n1,), dtype=jnp.float32) * 10.0 + 400.0
    s_o = jax.random.uniform(k7, (n1,), dtype=jnp.float32) * 5.0
    s_t = jax.random.uniform(k8, (n1,), dtype=jnp.float32) * 5.0
    s_t = jnp.where(jnp.arange(n1) % 5 == 0, -1.0, s_t)
    out1, tgt1 = (a_o, s_o), (a_t, s_t)
    for mse in (True, False):
        got = jax.block_until_ready(masked_ionmob_loss(out1, tgt1, use_mse=mse))
        ref = _reference_loss(out1, tgt1, use_mse=mse)
        assert jnp.allclose(got, ref, rtol=1e-4, atol=1e-4), (mse, got, ref)

    # ---- Pallas path: all std targets masked out ---------------------------------------
    tgt1_all_masked = (a_t, jnp.full((n1,), -1.0, dtype=jnp.float32))
    got = jax.block_until_ready(masked_ionmob_loss(out1, tgt1_all_masked, use_mse=True))
    ref = _reference_loss(out1, tgt1_all_masked, use_mse=True)
    assert jnp.allclose(got, ref, rtol=1e-4, atol=1e-4), (got, ref)

    # ---- Pallas path: multi-tile grid (2 x 2048-row tiles) + tail ----------------------
    k9, k10, k11, k12 = jax.random.split(jax.random.PRNGKey(2), 4)
    n2 = 600_000
    b_o = jax.random.normal(k9, (n2,), dtype=jnp.float32) * 10.0 + 400.0
    b_t = jax.random.normal(k10, (n2,), dtype=jnp.float32) * 10.0 + 400.0
    bs_o = jax.random.uniform(k11, (n2,), dtype=jnp.float32) * 5.0
    bs_t = jax.random.uniform(k12, (n2,), dtype=jnp.float32) * 5.0
    bs_t = jnp.where(jnp.arange(n2) % 4 == 0, -1.0, bs_t)
    out2, tgt2 = (b_o, bs_o), (b_t, bs_t)
    got = jax.block_until_ready(masked_ionmob_loss(out2, tgt2, use_mse=True))
    ref = _reference_loss(out2, tgt2, use_mse=True)
    assert jnp.allclose(got, ref, rtol=1e-4, atol=1e-4), (got, ref)

    print("KERNEL_OK")
</pallas_src>

<mosaic_0001>
module attributes {stable_mosaic.version = 11 : i64} {
  func.func @_ionmob_loss_kernel(%arg0: i32, %arg1: memref<768x128xf32, #tpu.memory_space<vmem>>, %arg2: memref<768x128xf32, #tpu.memory_space<vmem>>, %arg3: memref<768x128xf32, #tpu.memory_space<vmem>>, %arg4: memref<768x128xf32, #tpu.memory_space<vmem>>, %arg5: memref<3x8x128xf32, #tpu.memory_space<vmem>>) attributes {dimension_semantics = [#tpu.dimension_semantics<arbitrary>], iteration_bounds = array<i64: 1>, scalar_prefetch = 0 : i64, scratch_operands = 0 : i64, tpu.core_type = #tpu.core_type<tc>, window_params = [{transform_indices = @transform_0, window_bounds = array<i64: 768, 128>}, {transform_indices = @transform_1, window_bounds = array<i64: 768, 128>}, {transform_indices = @transform_2, window_bounds = array<i64: 768, 128>}, {transform_indices = @transform_3, window_bounds = array<i64: 768, 128>}, {pipeline_mode = #tpu.pipeline_mode<synchronous>, transform_indices = @transform_4, window_bounds = array<i64: 3, 8, 128>}]} {
    %c0_i32 = arith.constant 0 : i32
    %0 = arith.cmpi eq, %arg0, %c0_i32 : i32
    %1 = arith.extui %0 : i1 to i32
    %c0_i32_0 = arith.constant 0 : i32
    %2 = arith.cmpi ne, %1, %c0_i32_0 : i32
    scf.if %2 {
      %cst_136 = arith.constant 0.000000e+00 : f32
      %370 = vector.broadcast %cst_136 : f32 to vector<3x8x128xf32>
      %c0_137 = arith.constant 0 : index
      %c0_138 = arith.constant 0 : index
      %c0_139 = arith.constant 0 : index
      %371 = vector.load %arg5[%c0_137, %c0_138, %c0_139] : memref<3x8x128xf32, #tpu.memory_space<vmem>>, vector<3x8x128xf32>
      tpu.vector_store %arg5[%c0_137, %c0_138, %c0_139], %370 {strides = array<i32>} : memref<3x8x128xf32, #tpu.memory_space<vmem>>, vector<3x8x128xf32>,
    } else {
    }
    %cst = arith.constant 0.000000e+00 : f32
    %3 = vector.broadcast %cst : f32 to vector<8x128xf32>
    %c0_i32_1 = arith.constant 0 : i32
    %c64_i32 = arith.constant 64 : i32
    %4 = arith.muli %c0_i32_1, %c64_i32 : i32
    %5 = tpu.assume_multiple %4, 64 : i32
    %6 = arith.index_cast %5 : i32 to index
    %c0 = arith.constant 0 : index
    %7 = vector.load %arg1[%6, %c0] : memref<768x128xf32, #tpu.memory_space<vmem>>, vector<64x128xf32>
    %8 = arith.index_cast %5 : i32 to index
    %c0_2 = arith.constant 0 : index
    %9 = vector.load %arg2[%8, %c0_2] : memref<768x128xf32, #tpu.memory_space<vmem>>, vector<64x128xf32>
    %10 = arith.index_cast %5 : i32 to index
    %c0_3 = arith.constant 0 : index
    %11 = vector.load %arg3[%10, %c0_3] : memref<768x128xf32, #tpu.memory_space<vmem>>, vector<64x128xf32>
    %12 = arith.index_cast %5 : i32 to index
    %c0_4 = arith.constant 0 : index
    %13 = vector.load %arg4[%12, %c0_4] : memref<768x128xf32, #tpu.memory_space<vmem>>, vector<64x128xf32>
    %14 = arith.subf %7, %9 : vector<64x128xf32>
    %15 = arith.mulf %14, %14 : vector<64x128xf32>
    %cst_5 = arith.constant -1.000000e+00 : f32
    %16 = vector.broadcast %cst_5 : f32 to vector<64x128xf32>
    %17 = arith.cmpf one, %13, %16 : vector<64x128xf32>
    %18 = arith.subf %11, %13 : vector<64x128xf32>
    %19 = arith.mulf %18, %18 : vector<64x128xf32>
    %cst_6 = arith.constant 0.000000e+00 : f32
    %20 = vector.broadcast %cst_6 : f32 to vector<64x128xf32>
    %21 = arith.select %17, %19, %20 : vector<64x128xi1>, vector<64x128xf32>
    %22 = arith.extui %17 : vector<64x128xi1> to vector<64x128xi32>
    %23 = arith.sitofp %22 : vector<64x128xi32> to vector<64x128xf32>
    %24 = vector.shape_cast %15 : vector<64x128xf32> to vector<8x8x128xf32>
    %cst_7 = arith.constant dense<0.000000e+00> : vector<8x128xf32>
    %25 = vector.multi_reduction <add>, %24, %cst_7 [0] : vector<8x8x128xf32> to vector<8x128xf32>
    %26 = arith.addf %3, %25 : vector<8x128xf32>
    %27 = vector.shape_cast %21 : vector<64x128xf32> to vector<8x8x128xf32>
    %cst_8 = arith.constant dense<0.000000e+00> : vector<8x128xf32>
    %28 = vector.multi_reduction <add>, %27, %cst_8 [0] : vector<8x8x128xf32> to vector<8x128xf32>
    %29 = arith.addf %3, %28 : vector<8x128xf32>
    %30 = vector.shape_cast %23 : vector<64x128xf32> to vector<8x8x128xf32>
    %cst_9 = arith.constant dense<0.000000e+00> : vector<8x128xf32>
    %31 = vector.multi_reduction <add>, %30, %cst_9 [0] : vector<8x8x128xf32> to vector<8x128xf32>
    %32 = arith.addf %3, %31 : vector<8x128xf32>
    %c1_i32 = arith.constant 1 : i32
    %c64_i32_10 = arith.constant 64 : i32
    %33 = arith.muli %c1_i32, %c64_i32_10 : i32
    %34 = tpu.assume_multiple %33, 64 : i32
    %35 = arith.index_cast %34 : i32 to index
    %c0_11 = arith.constant 0 : index
    %36 = vector.load %arg1[%35, %c0_11] : memref<768x128xf32, #tpu.memory_space<vmem>>, vector<64x128xf32>
    %37 = arith.index_cast %34 : i32 to index
    %c0_12 = arith.constant 0 : index
    %38 = vector.load %arg2[%37, %c0_12] : memref<768x128xf32, #tpu.memory_space<vmem>>, vector<64x128xf32>
    %39 = arith.index_cast %34 : i32 to index
    %c0_13 = arith.constant 0 : index
    %40 = vector.load %arg3[%39, %c0_13] : memref<768x128xf32, #tpu.memory_space<vmem>>, vector<64x128xf32>
    %41 = arith.index_cast %34 : i32 to index
    %c0_14 = arith.constant 0 : index
    %42 = vector.load %arg4[%41, %c0_14] : memref<768x128xf32, #tpu.memory_space<vmem>>, vector<64x128xf32>
    %43 = arith.subf %36, %38 : vector<64x128xf32>
    %44 = arith.mulf %43, %43 : vector<64x128xf32>
    %cst_15 = arith.constant -1.000000e+00 : f32
    %45 = vector.broadcast %cst_15 : f32 to vector<64x128xf32>
    %46 = arith.cmpf one, %42, %45 : vector<64x128xf32>
    %47 = arith.subf %40, %42 : vector<64x128xf32>
    %48 = arith.mulf %47, %47 : vector<64x128xf32>
    %cst_16 = arith.constant 0.000000e+00 : f32
    %49 = vector.broadcast %cst_16 : f32 to vector<64x128xf32>
    %50 = arith.select %46, %48, %49 : vector<64x128xi1>, vector<64x128xf32>
    %51 = arith.extui %46 : vector<64x128xi1> to vector<64x128xi32>
    %52 = arith.sitofp %51 : vector<64x128xi32> to vector<64x128xf32>
    %53 = vector.shape_cast %44 : vector<64x128xf32> to vector<8x8x128xf32>
    %cst_17 = arith.constant dense<0.000000e+00> : vector<8x128xf32>
    %54 = vector.multi_reduction <add>, %53, %cst_17 [0] : vector<8x8x128xf32> to vector<8x128xf32>
    %55 = arith.addf %26, %54 : vector<8x128xf32>
    %56 = vector.shape_cast %50 : vector<64x128xf32> to vector<8x8x128xf32>
    %cst_18 = arith.constant dense<0.000000e+00> : vector<8x128xf32>
    %57 = vector.multi_reduction <add>, %56, %cst_18 [0] : vector<8x8x128xf32> to vector<8x128xf32>
    %58 = arith.addf %29, %57 : vector<8x128xf32>
    %59 = vector.shape_cast %52 : vector<64x128xf32> to vector<8x8x128xf32>
    %cst_19 = arith.constant dense<0.000000e+00> : vector<8x128xf32>
    %60 = vector.multi_reduction <add>, %59, %cst_19 [0] : vector<8x8x128xf32> to vector<8x128xf32>
    %61 = arith.addf %32, %60 : vector<8x128xf32>
    %c2_i32 = arith.constant 2 : i32
    %c64_i32_20 = arith.constant 64 : i32
    %62 = arith.muli %c2_i32, %c64_i32_20 : i32
    %63 = tpu.assume_multiple %62, 64 : i32
    %64 = arith.index_cast %63 : i32 to index
    %c0_21 = arith.constant 0 : index
    %65 = vector.load %arg1[%64, %c0_21] : memref<768x128xf32, #tpu.memory_space<vmem>>, vector<64x128xf32>
    %66 = arith.index_cast %63 : i32 to index
    %c0_22 = arith.constant 0 : index
    %67 = vector.load %arg2[%66, %c0_22] : memref<768x128xf32, #tpu.memory_space<vmem>>, vector<64x128xf32>
    %68 = arith.index_cast %63 : i32 to index
    %c0_23 = arith.constant 0 : index
    %69 = vector.load %arg3[%68, %c0_23] : memref<768x128xf32, #tpu.memory_space<vmem>>, vector<64x128xf32>
    %70 = arith.index_cast %63 : i32 to index
    %c0_24 = arith.constant 0 : index
    %71 = vector.load %arg4[%70, %c0_24] : memref<768x128xf32, #tpu.memory_space<vmem>>, vector<64x128xf32>
    %72 = arith.subf %65, %67 : vector<64x128xf32>
    %73 = arith.mulf %72, %72 : vector<64x128xf32>
    %cst_25 = arith.constant -1.000000e+00 : f32
    %74 = vector.broadcast %cst_25 : f32 to vector<64x128xf32>
    %75 = arith.cmpf one, %71, %74 : vector<64x128xf32>
    %76 = arith.subf %69, %71 : vector<64x128xf32>
    %77 = arith.mulf %76, %76 : vector<64x128xf32>
    %cst_26 = arith.constant 0.000000e+00 : f32
    %78 = vector.broadcast %cst_26 : f32 to vector<64x128xf32>
    %79 = arith.select %75, %77, %78 : vector<64x128xi1>, vector<64x128xf32>
    %80 = arith.extui %75 : vector<64x128xi1> to vector<64x128xi32>
    %81 = arith.sitofp %80 : vector<64x128xi32> to vector<64x128xf32>
    %82 = vector.shape_cast %73 : vector<64x128xf32> to vector<8x8x128xf32>
    %cst_27 = arith.constant dense<0.000000e+00> : vector<8x128xf32>
    %83 = vector.multi_reduction <add>, %82, %cst_27 [0] : vector<8x8x128xf32> to vector<8x128xf32>
    %84 = arith.addf %55, %83 : vector<8x128xf32>
    %85 = vector.shape_cast %79 : vector<64x128xf32> to vector<8x8x128xf32>
    %cst_28 = arith.constant dense<0.000000e+00> : vector<8x128xf32>
    %86 = vector.multi_reduction <add>, %85, %cst_28 [0] : vector<8x8x128xf32> to vector<8x128xf32>
    %87 = arith.addf %58, %86 : vector<8x128xf32>
    %88 = vector.shape_cast %81 : vector<64x128xf32> to vector<8x8x128xf32>
    %cst_29 = arith.constant dense<0.000000e+00> : vector<8x128xf32>
    %89 = vector.multi_reduction <add>, %88, %cst_29 [0] : vector<8x8x128xf32> to vector<8x128xf32>
    %90 = arith.addf %61, %89 : vector<8x128xf32>
    %c3_i32 = arith.constant 3 : i32
    %c64_i32_30 = arith.constant 64 : i32
    %91 = arith.muli %c3_i32, %c64_i32_30 : i32
    %92 = tpu.assume_multiple %91, 64 : i32
    %93 = arith.index_cast %92 : i32 to index
    %c0_31 = arith.constant 0 : index
    %94 = vector.load %arg1[%93, %c0_31] : memref<768x128xf32, #tpu.memory_space<vmem>>, vector<64x128xf32>
    %95 = arith.index_cast %92 : i32 to index
    %c0_32 = arith.constant 0 : index
    %96 = vector.load %arg2[%95, %c0_32] : memref<768x128xf32, #tpu.memory_space<vmem>>, vector<64x128xf32>
    %97 = arith.index_cast %92 : i32 to index
    %c0_33 = arith.constant 0 : index
    %98 = vector.load %arg3[%97, %c0_33] : memref<768x128xf32, #tpu.memory_space<vmem>>, vector<64x128xf32>
    %99 = arith.index_cast %92 : i32 to index
    %c0_34 = arith.constant 0 : index
    %100 = vector.load %arg4[%99, %c0_34] : memref<768x128xf32, #tpu.memory_space<vmem>>, vector<64x128xf32>
    %101 = arith.subf %94, %96 : vector<64x128xf32>
    %102 = arith.mulf %101, %101 : vector<64x128xf32>
    %cst_35 = arith.constant -1.000000e+00 : f32
    %103 = vector.broadcast %cst_35 : f32 to vector<64x128xf32>
    %104 = arith.cmpf one, %100, %103 : vector<64x128xf32>
    %105 = arith.subf %98, %100 : vector<64x128xf32>
    %106 = arith.mulf %105, %105 : vector<64x128xf32>
    %cst_36 = arith.constant 0.000000e+00 : f32
    %107 = vector.broadcast %cst_36 : f32 to vector<64x128xf32>
    %108 = arith.select %104, %106, %107 : vector<64x128xi1>, vector<64x128xf32>
    %109 = arith.extui %104 : vector<64x128xi1> to vector<64x128xi32>
    %110 = arith.sitofp %109 : vector<64x128xi32> to vector<64x128xf32>
    %111 = vector.shape_cast %102 : vector<64x128xf32> to vector<8x8x128xf32>
    %cst_37 = arith.constant dense<0.000000e+00> : vector<8x128xf32>
    %112 = vector.multi_reduction <add>, %111, %cst_37 [0] : vector<8x8x128xf32> to vector<8x128xf32>
    %113 = arith.addf %84, %112 : vector<8x128xf32>
    %114 = vector.shape_cast %108 : vector<64x128xf32> to vector<8x8x128xf32>
    %cst_38 = arith.constant dense<0.000000e+00> : vector<8x128xf32>
    %115 = vector.multi_reduction <add>, %114, %cst_38 [0] : vector<8x8x128xf32> to vector<8x128xf32>
    %116 = arith.addf %87, %115 : vector<8x128xf32>
    %117 = vector.shape_cast %110 : vector<64x128xf32> to vector<8x8x128xf32>
    %cst_39 = arith.constant dense<0.000000e+00> : vector<8x128xf32>
    %118 = vector.multi_reduction <add>, %117, %cst_39 [0] : vector<8x8x128xf32> to vector<8x128xf32>
    %119 = arith.addf %90, %118 : vector<8x128xf32>
    %c4_i32 = arith.constant 4 : i32
    %c64_i32_40 = arith.constant 64 : i32
    %120 = arith.muli %c4_i32, %c64_i32_40 : i32
    %121 = tpu.assume_multiple %120, 64 : i32
    %122 = arith.index_cast %121 : i32 to index
    %c0_41 = arith.constant 0 : index
    %123 = vector.load %arg1[%122, %c0_41] : memref<768x128xf32, #tpu.memory_space<vmem>>, vector<64x128xf32>
    %124 = arith.index_cast %121 : i32 to index
    %c0_42 = arith.constant 0 : index
    %125 = vector.load %arg2[%124, %c0_42] : memref<768x128xf32, #tpu.memory_space<vmem>>, vector<64x128xf32>
    %126 = arith.index_cast %121 : i32 to index
    %c0_43 = arith.constant 0 : index
    %127 = vector.load %arg3[%126, %c0_43] : memref<768x128xf32, #tpu.memory_space<vmem>>, vector<64x128xf32>
    %128 = arith.index_cast %121 : i32 to index
    %c0_44 = arith.constant 0 : index
    %129 = vector.load %arg4[%128, %c0_44] : memref<768x128xf32, #tpu.memory_space<vmem>>, vector<64x128xf32>
    %130 = arith.subf %123, %125 : vector<64x128xf32>
    %131 = arith.mulf %130, %130 : vector<64x128xf32>
    %cst_45 = arith.constant -1.000000e+00 : f32
    %132 = vector.broadcast %cst_45 : f32 to vector<64x128xf32>
    %133 = arith.cmpf one, %129, %132 : vector<64x128xf32>
    %134 = arith.subf %127, %129 : vector<64x128xf32>
    %135 = arith.mulf %134, %134 : vector<64x128xf32>
    %cst_46 = arith.constant 0.000000e+00 : f32
    %136 = vector.broadcast %cst_46 : f32 to vector<64x128xf32>
    %137 = arith.select %133, %135, %136 : vector<64x128xi1>, vector<64x128xf32>
    %138 = arith.extui %133 : vector<64x128xi1> to vector<64x128xi32>
    %139 = arith.sitofp %138 : vector<64x128xi32> to vector<64x128xf32>
    %140 = vector.shape_cast %131 : vector<64x128xf32> to vector<8x8x128xf32>
    %cst_47 = arith.constant dense<0.000000e+00> : vector<8x128xf32>
    %141 = vector.multi_reduction <add>, %140, %cst_47 [0] : vector<8x8x128xf32> to vector<8x128xf32>
    %142 = arith.addf %113, %141 : vector<8x128xf32>
    %143 = vector.shape_cast %137 : vector<64x128xf32> to vector<8x8x128xf32>
    %cst_48 = arith.constant dense<0.000000e+00> : vector<8x128xf32>
    %144 = vector.multi_reduction <add>, %143, %cst_48 [0] : vector<8x8x128xf32> to vector<8x128xf32>
    %145 = arith.addf %116, %144 : vector<8x128xf32>
    %146 = vector.shape_cast %139 : vector<64x128xf32> to vector<8x8x128xf32>
    %cst_49 = arith.constant dense<0.000000e+00> : vector<8x128xf32>
    %147 = vector.multi_reduction <add>, %146, %cst_49 [0] : vector<8x8x128xf32> to vector<8x128xf32>
    %148 = arith.addf %119, %147 : vector<8x128xf32>
    %c5_i32 = arith.constant 5 : i32
    %c64_i32_50 = arith.constant 64 : i32
    %149 = arith.muli %c5_i32, %c64_i32_50 : i32
    %150 = tpu.assume_multiple %149, 64 : i32
    %151 = arith.index_cast %150 : i32 to index
    %c0_51 = arith.constant 0 : index
    %152 = vector.load %arg1[%151, %c0_51] : memref<768x128xf32, #tpu.memory_space<vmem>>, vector<64x128xf32>
    %153 = arith.index_cast %150 : i32 to index
    %c0_52 = arith.constant 0 : index
    %154 = vector.load %arg2[%153, %c0_52] : memref<768x128xf32, #tpu.memory_space<vmem>>, vector<64x128xf32>
    %155 = arith.index_cast %150 : i32 to index
    %c0_53 = arith.constant 0 : index
    %156 = vector.load %arg3[%155, %c0_53] : memref<768x128xf32, #tpu.memory_space<vmem>>, vector<64x128xf32>
    %157 = arith.index_cast %150 : i32 to index
    %c0_54 = arith.constant 0 : index
    %158 = vector.load %arg4[%157, %c0_54] : memref<768x128xf32, #tpu.memory_space<vmem>>, vector<64x128xf32>
    %159 = arith.subf %152, %154 : vector<64x128xf32>
    %160 = arith.mulf %159, %159 : vector<64x128xf32>
    %cst_55 = arith.constant -1.000000e+00 : f32
    %161 = vector.broadcast %cst_55 : f32 to vector<64x128xf32>
    %162 = arith.cmpf one, %158, %161 : vector<64x128xf32>
    %163 = arith.subf %156, %158 : vector<64x128xf32>
    %164 = arith.mulf %163, %163 : vector<64x128xf32>
    %cst_56 = arith.constant 0.000000e+00 : f32
    %165 = vector.broadcast %cst_56 : f32 to vector<64x128xf32>
    %166 = arith.select %162, %164, %165 : vector<64x128xi1>, vector<64x128xf32>
    %167 = arith.extui %162 : vector<64x128xi1> to vector<64x128xi32>
    %168 = arith.sitofp %167 : vector<64x128xi32> to vector<64x128xf32>
    %169 = vector.shape_cast %160 : vector<64x128xf32> to vector<8x8x128xf32>
    %cst_57 = arith.constant dense<0.000000e+00> : vector<8x128xf32>
    %170 = vector.multi_reduction <add>, %169, %cst_57 [0] : vector<8x8x128xf32> to vector<8x128xf32>
    %171 = arith.addf %142, %170 : vector<8x128xf32>
    %172 = vector.shape_cast %166 : vector<64x128xf32> to vector<8x8x128xf32>
    %cst_58 = arith.constant dense<0.000000e+00> : vector<8x128xf32>
    %173 = vector.multi_reduction <add>, %172, %cst_58 [0] : vector<8x8x128xf32> to vector<8x128xf32>
    %174 = arith.addf %145, %173 : vector<8x128xf32>
    %175 = vector.shape_cast %168 : vector<64x128xf32> to vector<8x8x128xf32>
    %cst_59 = arith.constant dense<0.000000e+00> : vector<8x128xf32>
    %176 = vector.multi_reduction <add>, %175, %cst_59 [0] : vector<8x8x128xf32> to vector<8x128xf32>
    %177 = arith.addf %148, %176 : vector<8x128xf32>
    %c6_i32 = arith.constant 6 : i32
    %c64_i32_60 = arith.constant 64 : i32
    %178 = arith.muli %c6_i32, %c64_i32_60 : i32
    %179 = tpu.assume_multiple %178, 64 : i32
    %180 = arith.index_cast %179 : i32 to index
    %c0_61 = arith.constant 0 : index
    %181 = vector.load %arg1[%180, %c0_61] : memref<768x128xf32, #tpu.memory_space<vmem>>, vector<64x128xf32>
    %182 = arith.index_cast %179 : i32 to index
    %c0_62 = arith.constant 0 : index
    %183 = vector.load %arg2[%182, %c0_62] : memref<768x128xf32, #tpu.memory_space<vmem>>, vector<64x128xf32>
    %184 = arith.index_cast %179 : i32 to index
    %c0_63 = arith.constant 0 : index
    %185 = vector.load %arg3[%184, %c0_63] : memref<768x128xf32, #tpu.memory_space<vmem>>, vector<64x128xf32>
    %186 = arith.index_cast %179 : i32 to index
    %c0_64 = arith.constant 0 : index
    %187 = vector.load %arg4[%186, %c0_64] : memref<768x128xf32, #tpu.memory_space<vmem>>, vector<64x128xf32>
    %188 = arith.subf %181, %183 : vector<64x128xf32>
    %189 = arith.mulf %188, %188 : vector<64x128xf32>
    %cst_65 = arith.constant -1.000000e+00 : f32
    %190 = vector.broadcast %cst_65 : f32 to vector<64x128xf32>
    %191 = arith.cmpf one, %187, %190 : vector<64x128xf32>
    %192 = arith.subf %185, %187 : vector<64x128xf32>
    %193 = arith.mulf %192, %192 : vector<64x128xf32>
    %cst_66 = arith.constant 0.000000e+00 : f32
    %194 = vector.broadcast %cst_66 : f32 to vector<64x128xf32>
    %195 = arith.select %191, %193, %194 : vector<64x128xi1>, vector<64x128xf32>
    %196 = arith.extui %191 : vector<64x128xi1> to vector<64x128xi32>
    %197 = arith.sitofp %196 : vector<64x128xi32> to vector<64x128xf32>
    %198 = vector.shape_cast %189 : vector<64x128xf32> to vector<8x8x128xf32>
    %cst_67 = arith.constant dense<0.000000e+00> : vector<8x128xf32>
    %199 = vector.multi_reduction <add>, %198, %cst_67 [0] : vector<8x8x128xf32> to vector<8x128xf32>
    %200 = arith.addf %171, %199 : vector<8x128xf32>
    %201 = vector.shape_cast %195 : vector<64x128xf32> to vector<8x8x128xf32>
    %cst_68 = arith.constant dense<0.000000e+00> : vector<8x128xf32>
    %202 = vector.multi_reduction <add>, %201, %cst_68 [0] : vector<8x8x128xf32> to vector<8x128xf32>
    %203 = arith.addf %174, %202 : vector<8x128xf32>
    %204 = vector.shape_cast %197 : vector<64x128xf32> to vector<8x8x128xf32>
    %cst_69 = arith.constant dense<0.000000e+00> : vector<8x128xf32>
    %205 = vector.multi_reduction <add>, %204, %cst_69 [0] : vector<8x8x128xf32> to vector<8x128xf32>
    %206 = arith.addf %177, %205 : vector<8x128xf32>
    %c7_i32 = arith.constant 7 : i32
    %c64_i32_70 = arith.constant 64 : i32
    %207 = arith.muli %c7_i32, %c64_i32_70 : i32
    %208 = tpu.assume_multiple %207, 64 : i32
    %209 = arith.index_cast %208 : i32 to index
    %c0_71 = arith.constant 0 : index
    %210 = vector.load %arg1[%209, %c0_71] : memref<768x128xf32, #tpu.memory_space<vmem>>, vector<64x128xf32>
    %211 = arith.index_cast %208 : i32 to index
    %c0_72 = arith.constant 0 : index
    %212 = vector.load %arg2[%211, %c0_72] : memref<768x128xf32, #tpu.memory_space<vmem>>, vector<64x128xf32>
    %213 = arith.index_cast %208 : i32 to index
    %c0_73 = arith.constant 0 : index
    %214 = vector.load %arg3[%213, %c0_73] : memref<768x128xf32, #tpu.memory_space<vmem>>, vector<64x128xf32>
    %215 = arith.index_cast %208 : i32 to index
    %c0_74 = arith.constant 0 : index
    %216 = vector.load %arg4[%215, %c0_74] : memref<768x128xf32, #tpu.memory_space<vmem>>, vector<64x128xf32>
    %217 = arith.subf %210, %212 : vector<64x128xf32>
    %218 = arith.mulf %217, %217 : vector<64x128xf32>
    %cst_75 = arith.constant -1.000000e+00 : f32
    %219 = vector.broadcast %cst_75 : f32 to vector<64x128xf32>
    %220 = arith.cmpf one, %216, %219 : vector<64x128xf32>
    %221 = arith.subf %214, %216 : vector<64x128xf32>
    %222 = arith.mulf %221, %221 : vector<64x128xf32>
    %cst_76 = arith.constant 0.000000e+00 : f32
    %223 = vector.broadcast %cst_76 : f32 to vector<64x128xf32>
    %224 = arith.select %220, %222, %223 : vector<64x128xi1>, vector<64x128xf32>
    %225 = arith.extui %220 : vector<64x128xi1> to vector<64x128xi32>
    %226 = arith.sitofp %225 : vector<64x128xi32> to vector<64x128xf32>
    %227 = vector.shape_cast %218 : vector<64x128xf32> to vector<8x8x128xf32>
    %cst_77 = arith.constant dense<0.000000e+00> : vector<8x128xf32>
    %228 = vector.multi_reduction <add>, %227, %cst_77 [0] : vector<8x8x128xf32> to vector<8x128xf32>
    %229 = arith.addf %200, %228 : vector<8x128xf32>
    %230 = vector.shape_cast %224 : vector<64x128xf32> to vector<8x8x128xf32>
    %cst_78 = arith.constant dense<0.000000e+00> : vector<8x128xf32>
    %231 = vector.multi_reduction <add>, %230, %cst_78 [0] : vector<8x8x128xf32> to vector<8x128xf32>
    %232 = arith.addf %203, %231 : vector<8x128xf32>
    %233 = vector.shape_cast %226 : vector<64x128xf32> to vector<8x8x128xf32>
    %cst_79 = arith.constant dense<0.000000e+00> : vector<8x128xf32>
    %234 = vector.multi_reduction <add>, %233, %cst_79 [0] : vector<8x8x128xf32> to vector<8x128xf32>
    %235 = arith.addf %206, %234 : vector<8x128xf32>
    %c8_i32 = arith.constant 8 : i32
    %c64_i32_80 = arith.constant 64 : i32
    %236 = arith.muli %c8_i32, %c64_i32_80 : i32
    %237 = tpu.assume_multiple %236, 64 : i32
    %238 = arith.index_cast %237 : i32 to index
    %c0_81 = arith.constant 0 : index
    %239 = vector.load %arg1[%238, %c0_81] : memref<768x128xf32, #tpu.memory_space<vmem>>, vector<64x128xf32>
    %240 = arith.index_cast %237 : i32 to index
    %c0_82 = arith.constant 0 : index
    %241 = vector.load %arg2[%240, %c0_82] : memref<768x128xf32, #tpu.memory_space<vmem>>, vector<64x128xf32>
    %242 = arith.index_cast %237 : i32 to index
    %c0_83 = arith.constant 0 : index
    %243 = vector.load %arg3[%242, %c0_83] : memref<768x128xf32, #tpu.memory_space<vmem>>, vector<64x128xf32>
    %244 = arith.index_cast %237 : i32 to index
    %c0_84 = arith.constant 0 : index
    %245 = vector.load %arg4[%244, %c0_84] : memref<768x128xf32, #tpu.memory_space<vmem>>, vector<64x128xf32>
    %246 = arith.subf %239, %241 : vector<64x128xf32>
    %247 = arith.mulf %246, %246 : vector<64x128xf32>
    %cst_85 = arith.constant -1.000000e+00 : f32
    %248 = vector.broadcast %cst_85 : f32 to vector<64x128xf32>
    %249 = arith.cmpf one, %245, %248 : vector<64x128xf32>
    %250 = arith.subf %243, %245 : vector<64x128xf32>
    %251 = arith.mulf %250, %250 : vector<64x128xf32>
    %cst_86 = arith.constant 0.000000e+00 : f32
    %252 = vector.broadcast %cst_86 : f32 to vector<64x128xf32>
    %253 = arith.select %249, %251, %252 : vector<64x128xi1>, vector<64x128xf32>
    %254 = arith.extui %249 : vector<64x128xi1> to vector<64x128xi32>
    %255 = arith.sitofp %254 : vector<64x128xi32> to vector<64x128xf32>
    %256 = vector.shape_cast %247 : vector<64x128xf32> to vector<8x8x128xf32>
    %cst_87 = arith.constant dense<0.000000e+00> : vector<8x128xf32>
    %257 = vector.multi_reduction <add>, %256, %cst_87 [0] : vector<8x8x128xf32> to vector<8x128xf32>
    %258 = arith.addf %229, %257 : vector<8x128xf32>
    %259 = vector.shape_cast %253 : vector<64x128xf32> to vector<8x8x128xf32>
    %cst_88 = arith.constant dense<0.000000e+00> : vector<8x128xf32>
    %260 = vector.multi_reduction <add>, %259, %cst_88 [0] : vector<8x8x128xf32> to vector<8x128xf32>
    %261 = arith.addf %232, %260 : vector<8x128xf32>
    %262 = vector.shape_cast %255 : vector<64x128xf32> to vector<8x8x128xf32>
    %cst_89 = arith.constant dense<0.000000e+00> : vector<8x128xf32>
    %263 = vector.multi_reduction <add>, %262, %cst_89 [0] : vector<8x8x128xf32> to vector<8x128xf32>
    %264 = arith.addf %235, %263 : vector<8x128xf32>
    %c9_i32 = arith.constant 9 : i32
    %c64_i32_90 = arith.constant 64 : i32
    %265 = arith.muli %c9_i32, %c64_i32_90 : i32
    %266 = tpu.assume_multiple %265, 64 : i32
    %267 = arith.index_cast %266 : i32 to index
    %c0_91 = arith.constant 0 : index
    %268 = vector.load %arg1[%267, %c0_91] : memref<768x128xf32, #tpu.memory_space<vmem>>, vector<64x128xf32>
    %269 = arith.index_cast %266 : i32 to index
    %c0_92 = arith.constant 0 : index
    %270 = vector.load %arg2[%269, %c0_92] : memref<768x128xf32, #tpu.memory_space<vmem>>, vector<64x128xf32>
    %271 = arith.index_cast %266 : i32 to index
    %c0_93 = arith.constant 0 : index
    %272 = vector.load %arg3[%271, %c0_93] : memref<768x128xf32, #tpu.memory_space<vmem>>, vector<64x128xf32>
    %273 = arith.index_cast %266 : i32 to index
    %c0_94 = arith.constant 0 : index
    %274 = vector.load %arg4[%273, %c0_94] : memref<768x128xf32, #tpu.memory_space<vmem>>, vector<64x128xf32>
    %275 = arith.subf %268, %270 : vector<64x128xf32>
    %276 = arith.mulf %275, %275 : vector<64x128xf32>
    %cst_95 = arith.constant -1.000000e+00 : f32
    %277 = vector.broadcast %cst_95 : f32 to vector<64x128xf32>
    %278 = arith.cmpf one, %274, %277 : vector<64x128xf32>
    %279 = arith.subf %272, %274 : vector<64x128xf32>
    %280 = arith.mulf %279, %279 : vector<64x128xf32>
    %cst_96 = arith.constant 0.000000e+00 : f32
    %281 = vector.broadcast %cst_96 : f32 to vector<64x128xf32>
    %282 = arith.select %278, %280, %281 : vector<64x128xi1>, vector<64x128xf32>
    %283 = arith.extui %278 : vector<64x128xi1> to vector<64x128xi32>
    %284 = arith.sitofp %283 : vector<64x128xi32> to vector<64x128xf32>
    %285 = vector.shape_cast %276 : vector<64x128xf32> to vector<8x8x128xf32>
    %cst_97 = arith.constant dense<0.000000e+00> : vector<8x128xf32>
    %286 = vector.multi_reduction <add>, %285, %cst_97 [0] : vector<8x8x128xf32> to vector<8x128xf32>
    %287 = arith.addf %258, %286 : vector<8x128xf32>
    %288 = vector.shape_cast %282 : vector<64x128xf32> to vector<8x8x128xf32>
    %cst_98 = arith.constant dense<0.000000e+00> : vector<8x128xf32>
    %289 = vector.multi_reduction <add>, %288, %cst_98 [0] : vector<8x8x128xf32> to vector<8x128xf32>
    %290 = arith.addf %261, %289 : vector<8x128xf32>
    %291 = vector.shape_cast %284 : vector<64x128xf32> to vector<8x8x128xf32>
    %cst_99 = arith.constant dense<0.000000e+00> : vector<8x128xf32>
    %292 = vector.multi_reduction <add>, %291, %cst_99 [0] : vector<8x8x128xf32> to vector<8x128xf32>
    %293 = arith.addf %264, %292 : vector<8x128xf32>
    %c10_i32 = arith.constant 10 : i32
    %c64_i32_100 = arith.constant 64 : i32
    %294 = arith.muli %c10_i32, %c64_i32_100 : i32
    %295 = tpu.assume_multiple %294, 64 : i32
    %296 = arith.index_cast %295 : i32 to index
    %c0_101 = arith.constant 0 : index
    %297 = vector.load %arg1[%296, %c0_101] : memref<768x128xf32, #tpu.memory_space<vmem>>, vector<64x128xf32>
    %298 = arith.index_cast %295 : i32 to index
    %c0_102 = arith.constant 0 : index
    %299 = vector.load %arg2[%298, %c0_102] : memref<768x128xf32, #tpu.memory_space<vmem>>, vector<64x128xf32>
    %300 = arith.index_cast %295 : i32 to index
    %c0_103 = arith.constant 0 : index
    %301 = vector.load %arg3[%300, %c0_103] : memref<768x128xf32, #tpu.memory_space<vmem>>, vector<64x128xf32>
    %302 = arith.index_cast %295 : i32 to index
    %c0_104 = arith.constant 0 : index
    %303 = vector.load %arg4[%302, %c0_104] : memref<768x128xf32, #tpu.memory_space<vmem>>, vector<64x128xf32>
    %304 = arith.subf %297, %299 : vector<64x128xf32>
    %305 = arith.mulf %304, %304 : vector<64x128xf32>
    %cst_105 = arith.constant -1.000000e+00 : f32
    %306 = vector.broadcast %cst_105 : f32 to vector<64x128xf32>
    %307 = arith.cmpf one, %303, %306 : vector<64x128xf32>
    %308 = arith.subf %301, %303 : vector<64x128xf32>
    %309 = arith.mulf %308, %308 : vector<64x128xf32>
    %cst_106 = arith.constant 0.000000e+00 : f32
    %310 = vector.broadcast %cst_106 : f32 to vector<64x128xf32>
    %311 = arith.select %307, %309, %310 : vector<64x128xi1>, vector<64x128xf32>
    %312 = arith.extui %307 : vector<64x128xi1> to vector<64x128xi32>
    %313 = arith.sitofp %312 : vector<64x128xi32> to vector<64x128xf32>
    %314 = vector.shape_cast %305 : vector<64x128xf32> to vector<8x8x128xf32>
    %cst_107 = arith.constant dense<0.000000e+00> : vector<8x128xf32>
    %315 = vector.multi_reduction <add>, %314, %cst_107 [0] : vector<8x8x128xf32> to vector<8x128xf32>
    %316 = arith.addf %287, %315 : vector<8x128xf32>
    %317 = vector.shape_cast %311 : vector<64x128xf32> to vector<8x8x128xf32>
    %cst_108 = arith.constant dense<0.000000e+00> : vector<8x128xf32>
    %318 = vector.multi_reduction <add>, %317, %cst_108 [0] : vector<8x8x128xf32> to vector<8x128xf32>
    %319 = arith.addf %290, %318 : vector<8x128xf32>
    %320 = vector.shape_cast %313 : vector<64x128xf32> to vector<8x8x128xf32>
    %cst_109 = arith.constant dense<0.000000e+00> : vector<8x128xf32>
    %321 = vector.multi_reduction <add>, %320, %cst_109 [0] : vector<8x8x128xf32> to vector<8x128xf32>
    %322 = arith.addf %293, %321 : vector<8x128xf32>
    %c11_i32 = arith.constant 11 : i32
    %c64_i32_110 = arith.constant 64 : i32
    %323 = arith.muli %c11_i32, %c64_i32_110 : i32
    %324 = tpu.assume_multiple %323, 64 : i32
    %325 = arith.index_cast %324 : i32 to index
    %c0_111 = arith.constant 0 : index
    %326 = vector.load %arg1[%325, %c0_111] : memref<768x128xf32, #tpu.memory_space<vmem>>, vector<64x128xf32>
    %327 = arith.index_cast %324 : i32 to index
    %c0_112 = arith.constant 0 : index
    %328 = vector.load %arg2[%327, %c0_112] : memref<768x128xf32, #tpu.memory_space<vmem>>, vector<64x128xf32>
    %329 = arith.index_cast %324 : i32 to index
    %c0_113 = arith.constant 0 : index
    %330 = vector.load %arg3[%329, %c0_113] : memref<768x128xf32, #tpu.memory_space<vmem>>, vector<64x128xf32>
    %331 = arith.index_cast %324 : i32 to index
    %c0_114 = arith.constant 0 : index
    %332 = vector.load %arg4[%331, %c0_114] : memref<768x128xf32, #tpu.memory_space<vmem>>, vector<64x128xf32>
    %333 = arith.subf %326, %328 : vector<64x128xf32>
    %334 = arith.mulf %333, %333 : vector<64x128xf32>
    %cst_115 = arith.constant -1.000000e+00 : f32
    %335 = vector.broadcast %cst_115 : f32 to vector<64x128xf32>
    %336 = arith.cmpf one, %332, %335 : vector<64x128xf32>
    %337 = arith.subf %330, %332 : vector<64x128xf32>
    %338 = arith.mulf %337, %337 : vector<64x128xf32>
    %cst_116 = arith.constant 0.000000e+00 : f32
    %339 = vector.broadcast %cst_116 : f32 to vector<64x128xf32>
    %340 = arith.select %336, %338, %339 : vector<64x128xi1>, vector<64x128xf32>
    %341 = arith.extui %336 : vector<64x128xi1> to vector<64x128xi32>
    %342 = arith.sitofp %341 : vector<64x128xi32> to vector<64x128xf32>
    %343 = vector.shape_cast %334 : vector<64x128xf32> to vector<8x8x128xf32>
    %cst_117 = arith.constant dense<0.000000e+00> : vector<8x128xf32>
    %344 = vector.multi_reduction <add>, %343, %cst_117 [0] : vector<8x8x128xf32> to vector<8x128xf32>
    %345 = arith.addf %316, %344 : vector<8x128xf32>
    %346 = vector.shape_cast %340 : vector<64x128xf32> to vector<8x8x128xf32>
    %cst_118 = arith.constant dense<0.000000e+00> : vector<8x128xf32>
    %347 = vector.multi_reduction <add>, %346, %cst_118 [0] : vector<8x8x128xf32> to vector<8x128xf32>
    %348 = arith.addf %319, %347 : vector<8x128xf32>
    %349 = vector.shape_cast %342 : vector<64x128xf32> to vector<8x8x128xf32>
    %cst_119 = arith.constant dense<0.000000e+00> : vector<8x128xf32>
    %350 = vector.multi_reduction <add>, %349, %cst_119 [0] : vector<8x8x128xf32> to vector<8x128xf32>
    %351 = arith.addf %322, %350 : vector<8x128xf32>
    %c12_i32 = arith.constant 12 : i32
    %c0_120 = arith.constant 0 : index
    %c0_121 = arith.constant 0 : index
    %c0_122 = arith.constant 0 : index
    %352 = vector.load %arg5[%c0_120, %c0_121, %c0_122] : memref<3x8x128xf32, #tpu.memory_space<vmem>>, vector<1x8x128xf32>
    %353 = vector.shape_cast %352 : vector<1x8x128xf32> to vector<8x128xf32>
    %354 = arith.addf %353, %345 : vector<8x128xf32>
    %c0_123 = arith.constant 0 : index
    %c0_124 = arith.constant 0 : index
    %c0_125 = arith.constant 0 : index
    %355 = vector.load %arg5[%c0_123, %c0_124, %c0_125] : memref<3x8x128xf32, #tpu.memory_space<vmem>>, vector<1x8x128xf32>
    %356 = vector.shape_cast %355 : vector<1x8x128xf32> to vector<8x128xf32>
    %357 = vector.shape_cast %354 : vector<8x128xf32> to vector<1x8x128xf32>
    tpu.vector_store %arg5[%c0_123, %c0_124, %c0_125], %357 {strides = array<i32>} : memref<3x8x128xf32, #tpu.memory_space<vmem>>, vector<1x8x128xf32>,
    %c1 = arith.constant 1 : index
    %c0_126 = arith.constant 0 : index
    %c0_127 = arith.constant 0 : index
    %358 = vector.load %arg5[%c1, %c0_126, %c0_127] : memref<3x8x128xf32, #tpu.memory_space<vmem>>, vector<1x8x128xf32>
    %359 = vector.shape_cast %358 : vector<1x8x128xf32> to vector<8x128xf32>
    %360 = arith.addf %359, %348 : vector<8x128xf32>
    %c1_128 = arith.constant 1 : index
    %c0_129 = arith.constant 0 : index
    %c0_130 = arith.constant 0 : index
    %361 = vector.load %arg5[%c1_128, %c0_129, %c0_130] : memref<3x8x128xf32, #tpu.memory_space<vmem>>, vector<1x8x128xf32>
    %362 = vector.shape_cast %361 : vector<1x8x128xf32> to vector<8x128xf32>
    %363 = vector.shape_cast %360 : vector<8x128xf32> to vector<1x8x128xf32>
    tpu.vector_store %arg5[%c1_128, %c0_129, %c0_130], %363 {strides = array<i32>} : memref<3x8x128xf32, #tpu.memory_space<vmem>>, vector<1x8x128xf32>,
    %c2 = arith.constant 2 : index
    %c0_131 = arith.constant 0 : index
    %c0_132 = arith.constant 0 : index
    %364 = vector.load %arg5[%c2, %c0_131, %c0_132] : memref<3x8x128xf32, #tpu.memory_space<vmem>>, vector<1x8x128xf32>
    %365 = vector.shape_cast %364 : vector<1x8x128xf32> to vector<8x128xf32>
    %366 = arith.addf %365, %351 : vector<8x128xf32>
    %c2_133 = arith.constant 2 : index
    %c0_134 = arith.constant 0 : index
    %c0_135 = arith.constant 0 : index
    %367 = vector.load %arg5[%c2_133, %c0_134, %c0_135] : memref<3x8x128xf32, #tpu.memory_space<vmem>>, vector<1x8x128xf32>
    %368 = vector.shape_cast %367 : vector<1x8x128xf32> to vector<8x128xf32>
    %369 = vector.shape_cast %366 : vector<8x128xf32> to vector<1x8x128xf32>
    tpu.vector_store %arg5[%c2_133, %c0_134, %c0_135], %369 {strides = array<i32>} : memref<3x8x128xf32, #tpu.memory_space<vmem>>, vector<1x8x128xf32>,
    return
  }
  func.func @transform_0(%arg0: i32) -> (i32, i32) {
    %c0_i32 = arith.constant 0 : i32
    %c0_i32_0 = arith.constant 0 : i32
    return %arg0, %c0_i32 : i32, i32
  }
  func.func @transform_1(%arg0: i32) -> (i32, i32) {
    %c0_i32 = arith.constant 0 : i32
    %c0_i32_0 = arith.constant 0 : i32
    return %arg0, %c0_i32 : i32, i32
  }
  func.func @transform_2(%arg0: i32) -> (i32, i32) {
    %c0_i32 = arith.constant 0 : i32
    %c0_i32_0 = arith.constant 0 : i32
    return %arg0, %c0_i32 : i32, i32
  }
  func.func @transform_3(%arg0: i32) -> (i32, i32) {
    %c0_i32 = arith.constant 0 : i32
    %c0_i32_0 = arith.constant 0 : i32
    return %arg0, %c0_i32 : i32, i32
  }
  func.func @transform_4(%arg0: i32) -> (i32, i32, i32) {
    %c0_i32 = arith.constant 0 : i32
    %c0_i32_0 = arith.constant 0 : i32
    %c0_i32_1 = arith.constant 0 : i32
    %c0_i32_2 = arith.constant 0 : i32
    return %c0_i32, %c0_i32_0, %c0_i32_1 : i32, i32, i32
  }
}

</mosaic_0001>

<llo_original>
// kernel: tpu_custom_call.1
$region0: #{tpu_custom_call.1}
  #allocation0 [shape = 'u32[]', space=smem, size = 0x4, offset = 0x4, fixed_abs, tag = 'smem constant byte address 0x4 - core index']
  #allocation1 [shape = 'u32[144,128]{1,0:T(1,128)}', space=vmem, size = 0x12000, scoped, tag = 'internal scratch']
  %s0 = inlined_call_operand.hbm [shape: f32[768,128], index: 0, kind: input, shape index: {}]
  %s1 = inlined_call_operand.hbm [shape: f32[768,128], index: 1, kind: input, shape index: {}]
  %s2 = inlined_call_operand.hbm [shape: f32[768,128], index: 2, kind: input, shape index: {}]
  %s3 = inlined_call_operand.hbm [shape: f32[768,128], index: 3, kind: input, shape index: {}]
  %s4 = inlined_call_operand.hbm [shape: f32[3,8,128], index: 4, kind: output, shape index: {}]
  %s5 = sld [smem:[#allocation0]]
  $region46: #{tpu_custom_call.1} parent=0
    _
  %s7 = ssub.s32 1, %s5
  %s8 = scalar_select 0, %s7, %s5
  $region1: #{tpu_custom_call.1} parent=0
    #allocation2 [shape = 'u8[393216]{0}', space=vmem, size = 0x60000, scoped, tag = 'input window, operand 0, single buffered']
    #allocation3 [shape = 's32[1]{0}', space=sflag, size = 0x4, scoped, tag = 'scoped memory for tpu_custom_call.1']
    #allocation4 [shape = 's32[1]{0}', space=sflag, size = 0x4, scoped, tag = 'scoped memory for tpu_custom_call.1']
    #allocation5 [shape = 'u8[393216]{0}', space=vmem, size = 0x60000, scoped, tag = 'input window, operand 1, single buffered']
    #allocation6 [shape = 's32[1]{0}', space=sflag, size = 0x4, scoped, tag = 'scoped memory for tpu_custom_call.1']
    #allocation7 [shape = 'u8[393216]{0}', space=vmem, size = 0x60000, scoped, tag = 'input window, operand 2, single buffered']
    #allocation8 [shape = 'u8[393216]{0}', space=vmem, size = 0x60000, scoped, tag = 'input window, operand 3, single buffered']
    #allocation9 [shape = 's32[1]{0}', space=sflag, size = 0x4, scoped, tag = 'scoped memory for tpu_custom_call.1']
    #allocation10 [shape = 'u8[12288]{0}', space=vmem, size = 0x3000, scoped, tag = 'output window, operand 0, single buffered']
    %9 = vsyncpa [#allocation3], 0
    %10 = vsyncpa [#allocation6], 0
    %11 = vsyncpa [#allocation9], 0
    %12 = vsyncpa [#allocation4], 0
    // Predicated region
    $region2: #{tpu_custom_call.1} parent=1 // pred_check
      _
    $region3: #{tpu_custom_call.1} parent=1 // pred_check_branch
      %14 = sbr.rel (0) target = $region5
    $region4: #{tpu_custom_call.1} parent=1 // pred_region
      %s16 = ssub.s32 12288, 12288
      %17 = vsyncadd [#allocation3], %s16
      %s18 = sshll.u32 [#allocation2], 4
      %s19 = int_to_ptr.vmem [resolvable:$true] %s18
      %24 = dma.hbm_to_vmem [thread:$0]  %s0, 12288, %s19, [#allocation3], 128, 128, 8
    $region5: #{tpu_custom_call.1} parent=1 // pred_fallthru
      _
    // Predicated region
    $region6: #{tpu_custom_call.1} parent=1 // pred_check
      _
    $region7: #{tpu_custom_call.1} parent=1 // pred_check_branch
      %26 = sbr.rel (0) target = $region9
    $region8: #{tpu_custom_call.1} parent=1 // pred_region
      %s28 = ssub.s32 12288, 12288
      %29 = vsyncadd [#allocation6], %s28
      %s30 = sshll.u32 [#allocation5], 4
      %s31 = int_to_ptr.vmem [resolvable:$true] %s30
      %36 = dma.hbm_to_vmem [thread:$0]  %s1, 12288, %s31, [#allocation6], 128, 128, 8
    $region9: #{tpu_custom_call.1} parent=1 // pred_fallthru
      _
    // Predicated region
    $region10: #{tpu_custom_call.1} parent=1 // pred_check
      _
    $region11: #{tpu_custom_call.1} parent=1 // pred_check_branch
      %38 = sbr.rel (0) target = $region13
    $region12: #{tpu_custom_call.1} parent=1 // pred_region
      %s40 = ssub.s32 12288, 12288
      %41 = vsyncadd [#allocation6], %s40
      %s42 = sshll.u32 [#allocation7], 4
      %s43 = int_to_ptr.vmem [resolvable:$true] %s42
      %48 = dma.hbm_to_vmem [thread:$0]  %s2, 12288, %s43, [#allocation6], 128, 128, 8
    $region13: #{tpu_custom_call.1} parent=1 // pred_fallthru
      _
    // Predicated region
    $region14: #{tpu_custom_call.1} parent=1 // pred_check
      _
    $region15: #{tpu_custom_call.1} parent=1 // pred_check_branch
      %50 = sbr.rel (0) target = $region17
    $region16: #{tpu_custom_call.1} parent=1 // pred_region
      %s52 = ssub.s32 12288, 12288
      %53 = vsyncadd [#allocation9], %s52
      %s54 = sshll.u32 [#allocation8], 4
      %s55 = int_to_ptr.vmem [resolvable:$true] %s54
      %60 = dma.hbm_to_vmem [thread:$0]  %s3, 12288, %s55, [#allocation9], 128, 128, 8
    $region17: #{tpu_custom_call.1} parent=1 // pred_fallthru
      _
    // Predicated region
    $region18: #{tpu_custom_call.1} parent=1 // pred_check
      _
    $region19: #{tpu_custom_call.1} parent=1 // pred_check_branch
      %62 = sbr.rel (0) target = $region21
    $region20: #{tpu_custom_call.1} parent=1 // pred_region
      %63 = dma.done [#allocation3], 12288
    $region21: #{tpu_custom_call.1} parent=1 // pred_fallthru
      _
    // Predicated region
    $region22: #{tpu_custom_call.1} parent=1 // pred_check
      _
    $region23: #{tpu_custom_call.1} parent=1 // pred_check_branch
      %65 = sbr.rel (0) target = $region25
    $region24: #{tpu_custom_call.1} parent=1 // pred_region
      %66 = dma.done [#allocation6], 12288
    $region25: #{tpu_custom_call.1} parent=1 // pred_fallthru
      _
    // Predicated region
    $region26: #{tpu_custom_call.1} parent=1 // pred_check
      _
    $region27: #{tpu_custom_call.1} parent=1 // pred_check_branch
      %68 = sbr.rel (0) target = $region29
    $region28: #{tpu_custom_call.1} parent=1 // pred_region
      %69 = dma.done [#allocation6], 12288
    $region29: #{tpu_custom_call.1} parent=1 // pred_fallthru
      _
    // Predicated region
    $region30: #{tpu_custom_call.1} parent=1 // pred_check
      _
    $region31: #{tpu_custom_call.1} parent=1 // pred_check_branch
      %71 = sbr.rel (0) target = $region33
    $region32: #{tpu_custom_call.1} parent=1 // pred_region
      %72 = dma.done [#allocation9], 12288
    $region33: #{tpu_custom_call.1} parent=1 // pred_fallthru
      _
    %p73 = scmp.eq.s32.totalorder 0, 0
    // Predicated region
    $region34: #{tpu_custom_call.1} parent=1 // pred_check
      %p74 = pneg %p73
    $region35: #{tpu_custom_call.1} parent=1 // pred_check_branch
      %76 = sbr.rel (%p74) target = $region37
    $region36: #{tpu_custom_call.1} parent=1 // pred_region
      %77 = vst [vmem:[#allocation10] sm:$0xff] 0.0
      %78 = vst [vmem:[#allocation10 + $0x8] sm:$0xff] 0.0
      %79 = vst [vmem:[#allocation10 + $0x10] sm:$0xff] 0.0
    $region37: #{tpu_custom_call.1} parent=1 // pred_fallthru
      _
    %v80 = vld [vmem:[#allocation2] sm:$0xff]
    %v81 = vld [vmem:[#allocation2 + $0x8] sm:$0xff]
    %v82 = vld [vmem:[#allocation2 + $0x10] sm:$0xff]
    %v83 = vld [vmem:[#allocation2 + $0x18] sm:$0xff]
    %v84 = vld [vmem:[#allocation2 + $0x20] sm:$0xff]
    %v85 = vld [vmem:[#allocation2 + $0x28] sm:$0xff]
    %v86 = vld [vmem:[#allocation2 + $0x30] sm:$0xff]
    %v87 = vld [vmem:[#allocation2 + $0x38] sm:$0xff]
    %v88 = vld [vmem:[#allocation5] sm:$0xff]
    %v89 = vld [vmem:[#allocation5 + $0x8] sm:$0xff]
    %v90 = vld [vmem:[#allocation5 + $0x10] sm:$0xff]
    %v91 = vld [vmem:[#allocation5 + $0x18] sm:$0xff]
    %v92 = vld [vmem:[#allocation5 + $0x20] sm:$0xff]
    %v93 = vld [vmem:[#allocation5 + $0x28] sm:$0xff]
    %v94 = vld [vmem:[#allocation5 + $0x30] sm:$0xff]
    %v95 = vld [vmem:[#allocation5 + $0x38] sm:$0xff]
    %v96 = vld [vmem:[#allocation7] sm:$0xff]
    %v97 = vld [vmem:[#allocation7 + $0x8] sm:$0xff]
    %v98 = vld [vmem:[#allocation7 + $0x10] sm:$0xff]
    %v99 = vld [vmem:[#allocation7 + $0x18] sm:$0xff]
    %v100 = vld [vmem:[#allocation7 + $0x20] sm:$0xff]
    %v101 = vld [vmem:[#allocation7 + $0x28] sm:$0xff]
    %v102 = vld [vmem:[#allocation7 + $0x30] sm:$0xff]
    %v103 = vld [vmem:[#allocation7 + $0x38] sm:$0xff]
    %v104 = vld [vmem:[#allocation8] sm:$0xff]
    %v105 = vld [vmem:[#allocation8 + $0x8] sm:$0xff]
    %v106 = vld [vmem:[#allocation8 + $0x10] sm:$0xff]
    %v107 = vld [vmem:[#allocation8 + $0x18] sm:$0xff]
    %v108 = vld [vmem:[#allocation8 + $0x20] sm:$0xff]
    %v109 = vld [vmem:[#allocation8 + $0x28] sm:$0xff]
    %v110 = vld [vmem:[#allocation8 + $0x30] sm:$0xff]
    %v111 = vld [vmem:[#allocation8 + $0x38] sm:$0xff]
    %v112 = vsub.f32 %v80, %v88
    %v113 = vsub.f32 %v81, %v89
    %v114 = vsub.f32 %v82, %v90
    %v115 = vsub.f32 %v83, %v91
    %v116 = vsub.f32 %v84, %v92
    %v117 = vsub.f32 %v85, %v93
    %v118 = vsub.f32 %v86, %v94
    %v119 = vsub.f32 %v87, %v95
    %v120 = vmul.f32 %v112, %v112
    %v121 = vmul.f32 %v113, %v113
    %v122 = vmul.f32 %v114, %v114
    %v123 = vmul.f32 %v115, %v115
    %v124 = vmul.f32 %v116, %v116
    %v125 = vmul.f32 %v117, %v117
    %v126 = vmul.f32 %v118, %v118
    %v127 = vmul.f32 %v119, %v119
    %vm128 = vcmp.ne.f32.partialorder %v104, -1.0
    %vm129 = vcmp.ne.f32.partialorder %v105, -1.0
    %vm130 = vcmp.ne.f32.partialorder %v106, -1.0
    %vm131 = vcmp.ne.f32.partialorder %v107, -1.0
    %vm132 = vcmp.ne.f32.partialorder %v108, -1.0
    %vm133 = vcmp.ne.f32.partialorder %v109, -1.0
    %vm134 = vcmp.ne.f32.partialorder %v110, -1.0
    %vm135 = vcmp.ne.f32.partialorder %v111, -1.0
    %v136 = vsub.f32 %v96, %v104
    %v137 = vsub.f32 %v97, %v105
    %v138 = vsub.f32 %v98, %v106
    %v139 = vsub.f32 %v99, %v107
    %v140 = vsub.f32 %v100, %v108
    %v141 = vsub.f32 %v101, %v109
    %v142 = vsub.f32 %v102, %v110
    %v143 = vsub.f32 %v103, %v111
    %v144 = vmul.f32 %v136, %v136
    %v145 = vmul.f32 %v137, %v137
    %v146 = vmul.f32 %v138, %v138
    %v147 = vmul.f32 %v139, %v139
    %v148 = vmul.f32 %v140, %v140
    %v149 = vmul.f32 %v141, %v141
    %v150 = vmul.f32 %v142, %v142
    %v151 = vmul.f32 %v143, %v143
    %v152 = vsel %vm128, %v144, 0.0
    %v153 = vsel %vm129, %v145, 0.0
    %v154 = vsel %vm130, %v146, 0.0
    %v155 = vsel %vm131, %v147, 0.0
    %v156 = vsel %vm132, %v148, 0.0
    %v157 = vsel %vm133, %v149, 0.0
    %v158 = vsel %vm134, %v150, 0.0
    %v159 = vsel %vm135, %v151, 0.0
    %v160 = vsel %vm128, 1, 0
    %v161 = vsel %vm129, 1, 0
    %v162 = vsel %vm130, 1, 0
    %v163 = vsel %vm131, 1, 0
    %v164 = vsel %vm132, 1, 0
    %v165 = vsel %vm133, 1, 0
    %v166 = vsel %vm134, 1, 0
    %v167 = vsel %vm135, 1, 0
    %v168 = vcvt.s32.f32 %v160
    %v169 = vcvt.s32.f32 %v161
    %v170 = vcvt.s32.f32 %v162
    %v171 = vcvt.s32.f32 %v163
    %v172 = vcvt.s32.f32 %v164
    %v173 = vcvt.s32.f32 %v165
    %v174 = vcvt.s32.f32 %v166
    %v175 = vcvt.s32.f32 %v167
    %v176 = vadd.f32 %v120, %v121
    %v177 = vadd.f32 %v176, %v122
    %v178 = vadd.f32 %v177, %v123
    %v179 = vadd.f32 %v178, %v124
    %v180 = vadd.f32 %v179, %v125
    %v181 = vadd.f32 %v180, %v126
    %v182 = vadd.f32 %v181, %v127
    %v183 = vadd.f32 %v182, 0.0
    %v184 = vadd.f32 %v152, %v153
    %v185 = vadd.f32 %v184, %v154
    %v186 = vadd.f32 %v185, %v155
    %v187 = vadd.f32 %v186, %v156
    %v188 = vadd.f32 %v187, %v157
    %v189 = vadd.f32 %v188, %v158
    %v190 = vadd.f32 %v189, %v159
    %v191 = vadd.f32 %v190, 0.0
    %v192 = vadd.f32 %v168, %v169
    %v193 = vadd.f32 %v192, %v170
    %v194 = vadd.f32 %v193, %v171
    %v195 = vadd.f32 %v194, %v172
    %v196 = vadd.f32 %v195, %v173
    %v197 = vadd.f32 %v196, %v174
    %v198 = vadd.f32 %v197, %v175
    %v199 = vadd.f32 %v198, 0.0
    %s200 = scalar_lea.vmem [#allocation2], 64
    %v201 = vld [vmem:[%s200] sm:$0xff]
    %v202 = vld [vmem:[%s200 + $0x8] sm:$0xff]
    %v203 = vld [vmem:[%s200 + $0x10] sm:$0xff]
    %v204 = vld [vmem:[%s200 + $0x18] sm:$0xff]
    %v205 = vld [vmem:[%s200 + $0x20] sm:$0xff]
    %v206 = vld [vmem:[%s200 + $0x28] sm:$0xff]
    %v207 = vld [vmem:[%s200 + $0x30] sm:$0xff]
    %v208 = vld [vmem:[%s200 + $0x38] sm:$0xff]
    %s209 = scalar_lea.vmem [#allocation5], 64
    %v210 = vld [vmem:[%s209] sm:$0xff]
    %v211 = vld [vmem:[%s209 + $0x8] sm:$0xff]
    %v212 = vld [vmem:[%s209 + $0x10] sm:$0xff]
    %v213 = vld [vmem:[%s209 + $0x18] sm:$0xff]
    %v214 = vld [vmem:[%s209 + $0x20] sm:$0xff]
    %v215 = vld [vmem:[%s209 + $0x28] sm:$0xff]
    %v216 = vld [vmem:[%s209 + $0x30] sm:$0xff]
    %v217 = vld [vmem:[%s209 + $0x38] sm:$0xff]
    %s218 = scalar_lea.vmem [#allocation7], 64
    %v219 = vld [vmem:[%s218] sm:$0xff]
    %v220 = vld [vmem:[%s218 + $0x8] sm:$0xff]
    %v221 = vld [vmem:[%s218 + $0x10] sm:$0xff]
    %v222 = vld [vmem:[%s218 + $0x18] sm:$0xff]
    %v223 = vld [vmem:[%s218 + $0x20] sm:$0xff]
    %v224 = vld [vmem:[%s218 + $0x28] sm:$0xff]
    %v225 = vld [vmem:[%s218 + $0x30] sm:$0xff]
    %v226 = vld [vmem:[%s218 + $0x38] sm:$0xff]
    %s227 = scalar_lea.vmem [#allocation8], 64
    %v228 = vld [vmem:[%s227] sm:$0xff]
    %v229 = vld [vmem:[%s227 + $0x8] sm:$0xff]
    %v230 = vld [vmem:[%s227 + $0x10] sm:$0xff]
    %v231 = vld [vmem:[%s227 + $0x18] sm:$0xff]
    %v232 = vld [vmem:[%s227 + $0x20] sm:$0xff]
    %v233 = vld [vmem:[%s227 + $0x28] sm:$0xff]
    %v234 = vld [vmem:[%s227 + $0x30] sm:$0xff]
    %v235 = vld [vmem:[%s227 + $0x38] sm:$0xff]
    %v236 = vsub.f32 %v201, %v210
    %v237 = vsub.f32 %v202, %v211
    %v238 = vsub.f32 %v203, %v212
    %v239 = vsub.f32 %v204, %v213
    %v240 = vsub.f32 %v205, %v214
    %v241 = vsub.f32 %v206, %v215
    %v242 = vsub.f32 %v207, %v216
    %v243 = vsub.f32 %v208, %v217
    %v244 = vmul.f32 %v236, %v236
    %v245 = vmul.f32 %v237, %v237
    %v246 = vmul.f32 %v238, %v238
    %v247 = vmul.f32 %v239, %v239
    %v248 = vmul.f32 %v240, %v240
    %v249 = vmul.f32 %v241, %v241
    %v250 = vmul.f32 %v242, %v242
    %v251 = vmul.f32 %v243, %v243
    %vm252 = vcmp.ne.f32.partialorder %v228, -1.0
    %vm253 = vcmp.ne.f32.partialorder %v229, -1.0
    %vm254 = vcmp.ne.f32.partialorder %v230, -1.0
    %vm255 = vcmp.ne.f32.partialorder %v231, -1.0
    %vm256 = vcmp.ne.f32.partialorder %v232, -1.0
    %vm257 = vcmp.ne.f32.partialorder %v233, -1.0
    %vm258 = vcmp.ne.f32.partialorder %v234, -1.0
    %vm259 = vcmp.ne.f32.partialorder %v235, -1.0
    %v260 = vsub.f32 %v219, %v228
    %v261 = vsub.f32 %v220, %v229
    %v262 = vsub.f32 %v221, %v230
    %v263 = vsub.f32 %v222, %v231
    %v264 = vsub.f32 %v223, %v232
    %v265 = vsub.f32 %v224, %v233
    %v266 = vsub.f32 %v225, %v234
    %v267 = vsub.f32 %v226, %v235
    %v268 = vmul.f32 %v260, %v260
    %v269 = vmul.f32 %v261, %v261
    %v270 = vmul.f32 %v262, %v262
    %v271 = vmul.f32 %v263, %v263
    %v272 = vmul.f32 %v264, %v264
    %v273 = vmul.f32 %v265, %v265
    %v274 = vmul.f32 %v266, %v266
    %v275 = vmul.f32 %v267, %v267
    %v276 = vsel %vm252, %v268, 0.0
    %v277 = vsel %vm253, %v269, 0.0
    %v278 = vsel %vm254, %v270, 0.0
    %v279 = vsel %vm255, %v271, 0.0
    %v280 = vsel %vm256, %v272, 0.0
    %v281 = vsel %vm257, %v273, 0.0
    %v282 = vsel %vm258, %v274, 0.0
    %v283 = vsel %vm259, %v275, 0.0
    %v284 = vsel %vm252, 1, 0
    %v285 = vsel %vm253, 1, 0
    %v286 = vsel %vm254, 1, 0
    %v287 = vsel %vm255, 1, 0
    %v288 = vsel %vm256, 1, 0
    %v289 = vsel %vm257, 1, 0
    %v290 = vsel %vm258, 1, 0
    %v291 = vsel %vm259, 1, 0
    %v292 = vcvt.s32.f32 %v284
    %v293 = vcvt.s32.f32 %v285
    %v294 = vcvt.s32.f32 %v286
    %v295 = vcvt.s32.f32 %v287
    %v296 = vcvt.s32.f32 %v288
    %v297 = vcvt.s32.f32 %v289
    %v298 = vcvt.s32.f32 %v290
    %v299 = vcvt.s32.f32 %v291
    %v300 = vadd.f32 %v244, %v245
    %v301 = vadd.f32 %v300, %v246
    %v302 = vadd.f32 %v301, %v247
    %v303 = vadd.f32 %v302, %v248
    %v304 = vadd.f32 %v303, %v249
    %v305 = vadd.f32 %v304, %v250
    %v306 = vadd.f32 %v305, %v251
    %v307 = vadd.f32 %v183, %v306
    %v308 = vadd.f32 %v276, %v277
    %v309 = vadd.f32 %v308, %v278
    %v310 = vadd.f32 %v309, %v279
    %v311 = vadd.f32 %v310, %v280
    %v312 = vadd.f32 %v311, %v281
    %v313 = vadd.f32 %v312, %v282
    %v314 = vadd.f32 %v313, %v283
    %v315 = vadd.f32 %v191, %v314
    %v316 = vadd.f32 %v292, %v293
    %v317 = vadd.f32 %v316, %v294
    %v318 = vadd.f32 %v317, %v295
    %v319 = vadd.f32 %v318, %v296
    %v320 = vadd.f32 %v319, %v297
    %v321 = vadd.f32 %v320, %v298
    %v322 = vadd.f32 %v321, %v299
    %v323 = vadd.f32 %v199, %v322
    %s324 = scalar_lea.vmem [#allocation2], 128
    %v325 = vld [vmem:[%s324] sm:$0xff]
    %v326 = vld [vmem:[%s324 + $0x8] sm:$0xff]
    %v327 = vld [vmem:[%s324 + $0x10] sm:$0xff]
    %v328 = vld [vmem:[%s324 + $0x18] sm:$0xff]
    %v329 = vld [vmem:[%s324 + $0x20] sm:$0xff]
    %v330 = vld [vmem:[%s324 + $0x28] sm:$0xff]
    %v331 = vld [vmem:[%s324 + $0x30] sm:$0xff]
    %v332 = vld [vmem:[%s324 + $0x38] sm:$0xff]
    %s333 = scalar_lea.vmem [#allocation5], 128
    %v334 = vld [vmem:[%s333] sm:$0xff]
    %v335 = vld [vmem:[%s333 + $0x8] sm:$0xff]
    %v336 = vld [vmem:[%s333 + $0x10] sm:$0xff]
    %v337 = vld [vmem:[%s333 + $0x18] sm:$0xff]
    %v338 = vld [vmem:[%s333 + $0x20] sm:$0xff]
    %v339 = vld [vmem:[%s333 + $0x28] sm:$0xff]
    %v340 = vld [vmem:[%s333 + $0x30] sm:$0xff]
    %v341 = vld [vmem:[%s333 + $0x38] sm:$0xff]
    %s342 = scalar_lea.vmem [#allocation7], 128
    %v343 = vld [vmem:[%s342] sm:$0xff]
    %v344 = vld [vmem:[%s342 + $0x8] sm:$0xff]
    %v345 = vld [vmem:[%s342 + $0x10] sm:$0xff]
    %v346 = vld [vmem:[%s342 + $0x18] sm:$0xff]
    %v347 = vld [vmem:[%s342 + $0x20] sm:$0xff]
    %v348 = vld [vmem:[%s342 + $0x28] sm:$0xff]
    %v349 = vld [vmem:[%s342 + $0x30] sm:$0xff]
    %v350 = vld [vmem:[%s342 + $0x38] sm:$0xff]
    %s351 = scalar_lea.vmem [#allocation8], 128
    %v352 = vld [vmem:[%s351] sm:$0xff]
    %v353 = vld [vmem:[%s351 + $0x8] sm:$0xff]
    %v354 = vld [vmem:[%s351 + $0x10] sm:$0xff]
    %v355 = vld [vmem:[%s351 + $0x18] sm:$0xff]
    %v356 = vld [vmem:[%s351 + $0x20] sm:$0xff]
    %v357 = vld [vmem:[%s351 + $0x28] sm:$0xff]
    %v358 = vld [vmem:[%s351 + $0x30] sm:$0xff]
    %v359 = vld [vmem:[%s351 + $0x38] sm:$0xff]
    %v360 = vsub.f32 %v325, %v334
    %v361 = vsub.f32 %v326, %v335
    %v362 = vsub.f32 %v327, %v336
    %v363 = vsub.f32 %v328, %v337
    %v364 = vsub.f32 %v329, %v338
    %v365 = vsub.f32 %v330, %v339
    %v366 = vsub.f32 %v331, %v340
    %v367 = vsub.f32 %v332, %v341
    %v368 = vmul.f32 %v360, %v360
    %v369 = vmul.f32 %v361, %v361
    %v370 = vmul.f32 %v362, %v362
    %v371 = vmul.f32 %v363, %v363
    %v372 = vmul.f32 %v364, %v364
    %v373 = vmul.f32 %v365, %v365
    %v374 = vmul.f32 %v366, %v366
    %v375 = vmul.f32 %v367, %v367
    %vm376 = vcmp.ne.f32.partialorder %v352, -1.0
    %vm377 = vcmp.ne.f32.partialorder %v353, -1.0
    %vm378 = vcmp.ne.f32.partialorder %v354, -1.0
    %vm379 = vcmp.ne.f32.partialorder %v355, -1.0
    %vm380 = vcmp.ne.f32.partialorder %v356, -1.0
    %vm381 = vcmp.ne.f32.partialorder %v357, -1.0
    %vm382 = vcmp.ne.f32.partialorder %v358, -1.0
    %vm383 = vcmp.ne.f32.partialorder %v359, -1.0
    %v384 = vsub.f32 %v343, %v352
    %v385 = vsub.f32 %v344, %v353
    %v386 = vsub.f32 %v345, %v354
    %v387 = vsub.f32 %v346, %v355
    %v388 = vsub.f32 %v347, %v356
    %v389 = vsub.f32 %v348, %v357
    %v390 = vsub.f32 %v349, %v358
    %v391 = vsub.f32 %v350, %v359
    %v392 = vmul.f32 %v384, %v384
    %v393 = vmul.f32 %v385, %v385
    %v394 = vmul.f32 %v386, %v386
    %v395 = vmul.f32 %v387, %v387
    %v396 = vmul.f32 %v388, %v388
    %v397 = vmul.f32 %v389, %v389
    %v398 = vmul.f32 %v390, %v390
    %v399 = vmul.f32 %v391, %v391
    %v400 = vsel %vm376, %v392, 0.0
    %v401 = vsel %vm377, %v393, 0.0
    %v402 = vsel %vm378, %v394, 0.0
    %v403 = vsel %vm379, %v395, 0.0
    %v404 = vsel %vm380, %v396, 0.0
    %v405 = vsel %vm381, %v397, 0.0
    %v406 = vsel %vm382, %v398, 0.0
    %v407 = vsel %vm383, %v399, 0.0
    %v408 = vsel %vm376, 1, 0
    %v409 = vsel %vm377, 1, 0
    %v410 = vsel %vm378, 1, 0
    %v411 = vsel %vm379, 1, 0
    %v412 = vsel %vm380, 1, 0
    %v413 = vsel %vm381, 1, 0
    %v414 = vsel %vm382, 1, 0
    %v415 = vsel %vm383, 1, 0
    %v416 = vcvt.s32.f32 %v408
    %v417 = vcvt.s32.f32 %v409
    %v418 = vcvt.s32.f32 %v410
    %v419 = vcvt.s32.f32 %v411
    %v420 = vcvt.s32.f32 %v412
    %v421 = vcvt.s32.f32 %v413
    %v422 = vcvt.s32.f32 %v414
    %v423 = vcvt.s32.f32 %v415
    %v424 = vadd.f32 %v368, %v369
    %v425 = vadd.f32 %v424, %v370
    %v426 = vadd.f32 %v425, %v371
    %v427 = vadd.f32 %v426, %v372
    %v428 = vadd.f32 %v427, %v373
    %v429 = vadd.f32 %v428, %v374
    %v430 = vadd.f32 %v429, %v375
    %v431 = vadd.f32 %v307, %v430
    %v432 = vadd.f32 %v400, %v401
    %v433 = vadd.f32 %v432, %v402
    %v434 = vadd.f32 %v433, %v403
    %v435 = vadd.f32 %v434, %v404
    %v436 = vadd.f32 %v435, %v405
    %v437 = vadd.f32 %v436, %v406
    %v438 = vadd.f32 %v437, %v407
    %v439 = vadd.f32 %v315, %v438
    %v440 = vadd.f32 %v416, %v417
    %v441 = vadd.f32 %v440, %v418
    %v442 = vadd.f32 %v441, %v419
    %v443 = vadd.f32 %v442, %v420
    %v444 = vadd.f32 %v443, %v421
    %v445 = vadd.f32 %v444, %v422
    %v446 = vadd.f32 %v445, %v423
    %v447 = vadd.f32 %v323, %v446
    %s448 = scalar_lea.vmem [#allocation2], 192
    %v449 = vld [vmem:[%s448] sm:$0xff]
    %v450 = vld [vmem:[%s448 + $0x8] sm:$0xff]
    %v451 = vld [vmem:[%s448 + $0x10] sm:$0xff]
    %v452 = vld [vmem:[%s448 + $0x18] sm:$0xff]
    %v453 = vld [vmem:[%s448 + $0x20] sm:$0xff]
    %v454 = vld [vmem:[%s448 + $0x28] sm:$0xff]
    %v455 = vld [vmem:[%s448 + $0x30] sm:$0xff]
    %v456 = vld [vmem:[%s448 + $0x38] sm:$0xff]
    %s457 = scalar_lea.vmem [#allocation5], 192
    %v458 = vld [vmem:[%s457] sm:$0xff]
    %v459 = vld [vmem:[%s457 + $0x8] sm:$0xff]
    %v460 = vld [vmem:[%s457 + $0x10] sm:$0xff]
    %v461 = vld [vmem:[%s457 + $0x18] sm:$0xff]
    %v462 = vld [vmem:[%s457 + $0x20] sm:$0xff]
    %v463 = vld [vmem:[%s457 + $0x28] sm:$0xff]
    %v464 = vld [vmem:[%s457 + $0x30] sm:$0xff]
    %v465 = vld [vmem:[%s457 + $0x38] sm:$0xff]
    %s466 = scalar_lea.vmem [#allocation7], 192
    %v467 = vld [vmem:[%s466] sm:$0xff]
    %v468 = vld [vmem:[%s466 + $0x8] sm:$0xff]
    %v469 = vld [vmem:[%s466 + $0x10] sm:$0xff]
    %v470 = vld [vmem:[%s466 + $0x18] sm:$0xff]
    %v471 = vld [vmem:[%s466 + $0x20] sm:$0xff]
    %v472 = vld [vmem:[%s466 + $0x28] sm:$0xff]
    %v473 = vld [vmem:[%s466 + $0x30] sm:$0xff]
    %v474 = vld [vmem:[%s466 + $0x38] sm:$0xff]
    %s475 = scalar_lea.vmem [#allocation8], 192
    %v476 = vld [vmem:[%s475] sm:$0xff]
    %v477 = vld [vmem:[%s475 + $0x8] sm:$0xff]
    %v478 = vld [vmem:[%s475 + $0x10] sm:$0xff]
    %v479 = vld [vmem:[%s475 + $0x18] sm:$0xff]
    %v480 = vld [vmem:[%s475 + $0x20] sm:$0xff]
    %v481 = vld [vmem:[%s475 + $0x28] sm:$0xff]
    %v482 = vld [vmem:[%s475 + $0x30] sm:$0xff]
    %v483 = vld [vmem:[%s475 + $0x38] sm:$0xff]
    %v484 = vsub.f32 %v449, %v458
    %v485 = vsub.f32 %v450, %v459
    %v486 = vsub.f32 %v451, %v460
    %v487 = vsub.f32 %v452, %v461
    %v488 = vsub.f32 %v453, %v462
    %v489 = vsub.f32 %v454, %v463
    %v490 = vsub.f32 %v455, %v464
    %v491 = vsub.f32 %v456, %v465
    %v492 = vmul.f32 %v484, %v484
    %v493 = vmul.f32 %v485, %v485
    %v494 = vmul.f32 %v486, %v486
    %v495 = vmul.f32 %v487, %v487
    %v496 = vmul.f32 %v488, %v488
    %v497 = vmul.f32 %v489, %v489
    %v498 = vmul.f32 %v490, %v490
    %v499 = vmul.f32 %v491, %v491
    %vm500 = vcmp.ne.f32.partialorder %v476, -1.0
    %vm501 = vcmp.ne.f32.partialorder %v477, -1.0
    %vm502 = vcmp.ne.f32.partialorder %v478, -1.0
    %vm503 = vcmp.ne.f32.partialorder %v479, -1.0
    %vm504 = vcmp.ne.f32.partialorder %v480, -1.0
    %vm505 = vcmp.ne.f32.partialorder %v481, -1.0
    %vm506 = vcmp.ne.f32.partialorder %v482, -1.0
    %vm507 = vcmp.ne.f32.partialorder %v483, -1.0
    %v508 = vsub.f32 %v467, %v476
    %v509 = vsub.f32 %v468, %v477
    %v510 = vsub.f32 %v469, %v478
    %v511 = vsub.f32 %v470, %v479
    %v512 = vsub.f32 %v471, %v480
    %v513 = vsub.f32 %v472, %v481
    %v514 = vsub.f32 %v473, %v482
    %v515 = vsub.f32 %v474, %v483
    %v516 = vmul.f32 %v508, %v508
    %v517 = vmul.f32 %v509, %v509
    %v518 = vmul.f32 %v510, %v510
    %v519 = vmul.f32 %v511, %v511
    %v520 = vmul.f32 %v512, %v512
    %v521 = vmul.f32 %v513, %v513
    %v522 = vmul.f32 %v514, %v514
    %v523 = vmul.f32 %v515, %v515
    %v524 = vsel %vm500, %v516, 0.0
    %v525 = vsel %vm501, %v517, 0.0
    %v526 = vsel %vm502, %v518, 0.0
    %v527 = vsel %vm503, %v519, 0.0
    %v528 = vsel %vm504, %v520, 0.0
    %v529 = vsel %vm505, %v521, 0.0
    %v530 = vsel %vm506, %v522, 0.0
    %v531 = vsel %vm507, %v523, 0.0
    %v532 = vsel %vm500, 1, 0
    %v533 = vsel %vm501, 1, 0
    %v534 = vsel %vm502, 1, 0
    %v535 = vsel %vm503, 1, 0
    %v536 = vsel %vm504, 1, 0
    %v537 = vsel %vm505, 1, 0
    %v538 = vsel %vm506, 1, 0
    %v539 = vsel %vm507, 1, 0
    %v540 = vcvt.s32.f32 %v532
    %v541 = vcvt.s32.f32 %v533
    %v542 = vcvt.s32.f32 %v534
    %v543 = vcvt.s32.f32 %v535
    %v544 = vcvt.s32.f32 %v536
    %v545 = vcvt.s32.f32 %v537
    %v546 = vcvt.s32.f32 %v538
    %v547 = vcvt.s32.f32 %v539
    %v548 = vadd.f32 %v492, %v493
    %v549 = vadd.f32 %v548, %v494
    %v550 = vadd.f32 %v549, %v495
    %v551 = vadd.f32 %v550, %v496
    %v552 = vadd.f32 %v551, %v497
    %v553 = vadd.f32 %v552, %v498
    %v554 = vadd.f32 %v553, %v499
    %v555 = vadd.f32 %v431, %v554
    %v556 = vadd.f32 %v524, %v525
    %v557 = vadd.f32 %v556, %v526
    %v558 = vadd.f32 %v557, %v527
    %v559 = vadd.f32 %v558, %v528
    %v560 = vadd.f32 %v559, %v529
    %v561 = vadd.f32 %v560, %v530
    %v562 = vadd.f32 %v561, %v531
    %v563 = vadd.f32 %v439, %v562
    %v564 = vadd.f32 %v540, %v541
    %v565 = vadd.f32 %v564, %v542
    %v566 = vadd.f32 %v565, %v543
    %v567 = vadd.f32 %v566, %v544
    %v568 = vadd.f32 %v567, %v545
    %v569 = vadd.f32 %v568, %v546
    %v570 = vadd.f32 %v569, %v547
    %v571 = vadd.f32 %v447, %v570
    %s572 = scalar_lea.vmem [#allocation2], 256
    %v573 = vld [vmem:[%s572] sm:$0xff]
    %v574 = vld [vmem:[%s572 + $0x8] sm:$0xff]
    %v575 = vld [vmem:[%s572 + $0x10] sm:$0xff]
    %v576 = vld [vmem:[%s572 + $0x18] sm:$0xff]
    %v577 = vld [vmem:[%s572 + $0x20] sm:$0xff]
    %v578 = vld [vmem:[%s572 + $0x28] sm:$0xff]
    %v579 = vld [vmem:[%s572 + $0x30] sm:$0xff]
    %v580 = vld [vmem:[%s572 + $0x38] sm:$0xff]
    %s581 = scalar_lea.vmem [#allocation5], 256
    %v582 = vld [vmem:[%s581] sm:$0xff]
    %v583 = vld [vmem:[%s581 + $0x8] sm:$0xff]
    %v584 = vld [vmem:[%s581 + $0x10] sm:$0xff]
    %v585 = vld [vmem:[%s581 + $0x18] sm:$0xff]
    %v586 = vld [vmem:[%s581 + $0x20] sm:$0xff]
    %v587 = vld [vmem:[%s581 + $0x28] sm:$0xff]
    %v588 = vld [vmem:[%s581 + $0x30] sm:$0xff]
    %v589 = vld [vmem:[%s581 + $0x38] sm:$0xff]
    %s590 = scalar_lea.vmem [#allocation7], 256
    %v591 = vld [vmem:[%s590] sm:$0xff]
    %v592 = vld [vmem:[%s590 + $0x8] sm:$0xff]
    %v593 = vld [vmem:[%s590 + $0x10] sm:$0xff]
    %v594 = vld [vmem:[%s590 + $0x18] sm:$0xff]
    %v595 = vld [vmem:[%s590 + $0x20] sm:$0xff]
    %v596 = vld [vmem:[%s590 + $0x28] sm:$0xff]
    %v597 = vld [vmem:[%s590 + $0x30] sm:$0xff]
    %v598 = vld [vmem:[%s590 + $0x38] sm:$0xff]
    %s599 = scalar_lea.vmem [#allocation8], 256
    %v600 = vld [vmem:[%s599] sm:$0xff]
    %v601 = vld [vmem:[%s599 + $0x8] sm:$0xff]
    %v602 = vld [vmem:[%s599 + $0x10] sm:$0xff]
    %v603 = vld [vmem:[%s599 + $0x18] sm:$0xff]
    %v604 = vld [vmem:[%s599 + $0x20] sm:$0xff]
    %v605 = vld [vmem:[%s599 + $0x28] sm:$0xff]
    %v606 = vld [vmem:[%s599 + $0x30] sm:$0xff]
    %v607 = vld [vmem:[%s599 + $0x38] sm:$0xff]
    %v608 = vsub.f32 %v573, %v582
    %v609 = vsub.f32 %v574, %v583
    %v610 = vsub.f32 %v575, %v584
    %v611 = vsub.f32 %v576, %v585
    %v612 = vsub.f32 %v577, %v586
    %v613 = vsub.f32 %v578, %v587
    %v614 = vsub.f32 %v579, %v588
    %v615 = vsub.f32 %v580, %v589
    %v616 = vmul.f32 %v608, %v608
    %v617 = vmul.f32 %v609, %v609
    %v618 = vmul.f32 %v610, %v610
    %v619 = vmul.f32 %v611, %v611
    %v620 = vmul.f32 %v612, %v612
    %v621 = vmul.f32 %v613, %v613
    %v622 = vmul.f32 %v614, %v614
    %v623 = vmul.f32 %v615, %v615
    %vm624 = vcmp.ne.f32.partialorder %v600, -1.0
    %vm625 = vcmp.ne.f32.partialorder %v601, -1.0
    %vm626 = vcmp.ne.f32.partialorder %v602, -1.0
    %vm627 = vcmp.ne.f32.partialorder %v603, -1.0
    %vm628 = vcmp.ne.f32.partialorder %v604, -1.0
    %vm629 = vcmp.ne.f32.partialorder %v605, -1.0
    %vm630 = vcmp.ne.f32.partialorder %v606, -1.0
    %vm631 = vcmp.ne.f32.partialorder %v607, -1.0
    %v632 = vsub.f32 %v591, %v600
    %v633 = vsub.f32 %v592, %v601
    %v634 = vsub.f32 %v593, %v602
    %v635 = vsub.f32 %v594, %v603
    %v636 = vsub.f32 %v595, %v604
    %v637 = vsub.f32 %v596, %v605
    %v638 = vsub.f32 %v597, %v606
    %v639 = vsub.f32 %v598, %v607
    %v640 = vmul.f32 %v632, %v632
    %v641 = vmul.f32 %v633, %v633
    %v642 = vmul.f32 %v634, %v634
    %v643 = vmul.f32 %v635, %v635
    %v644 = vmul.f32 %v636, %v636
    %v645 = vmul.f32 %v637, %v637
    %v646 = vmul.f32 %v638, %v638
    %v647 = vmul.f32 %v639, %v639
    %v648 = vsel %vm624, %v640, 0.0
    %v649 = vsel %vm625, %v641, 0.0
    %v650 = vsel %vm626, %v642, 0.0
    %v651 = vsel %vm627, %v643, 0.0
    %v652 = vsel %vm628, %v644, 0.0
    %v653 = vsel %vm629, %v645, 0.0
    %v654 = vsel %vm630, %v646, 0.0
    %v655 = vsel %vm631, %v647, 0.0
    %v656 = vsel %vm624, 1, 0
    %v657 = vsel %vm625, 1, 0
    %v658 = vsel %vm626, 1, 0
    %v659 = vsel %vm627, 1, 0
    %v660 = vsel %vm628, 1, 0
    %v661 = vsel %vm629, 1, 0
    %v662 = vsel %vm630, 1, 0
    %v663 = vsel %vm631, 1, 0
    %v664 = vcvt.s32.f32 %v656
    %v665 = vcvt.s32.f32 %v657
    %v666 = vcvt.s32.f32 %v658
    %v667 = vcvt.s32.f32 %v659
    %v668 = vcvt.s32.f32 %v660
    %v669 = vcvt.s32.f32 %v661
    %v670 = vcvt.s32.f32 %v662
    %v671 = vcvt.s32.f32 %v663
    %v672 = vadd.f32 %v616, %v617
    %v673 = vadd.f32 %v672, %v618
    %v674 = vadd.f32 %v673, %v619
    %v675 = vadd.f32 %v674, %v620
    %v676 = vadd.f32 %v675, %v621
    %v677 = vadd.f32 %v676, %v622
    %v678 = vadd.f32 %v677, %v623
    %v679 = vadd.f32 %v555, %v678
    %v680 = vadd.f32 %v648, %v649
    %v681 = vadd.f32 %v680, %v650
    %v682 = vadd.f32 %v681, %v651
    %v683 = vadd.f32 %v682, %v652
    %v684 = vadd.f32 %v683, %v653
    %v685 = vadd.f32 %v684, %v654
    %v686 = vadd.f32 %v685, %v655
    %v687 = vadd.f32 %v563, %v686
    %v688 = vadd.f32 %v664, %v665
    %v689 = vadd.f32 %v688, %v666
    %v690 = vadd.f32 %v689, %v667
    %v691 = vadd.f32 %v690, %v668
    %v692 = vadd.f32 %v691, %v669
    %v693 = vadd.f32 %v692, %v670
    %v694 = vadd.f32 %v693, %v671
    %v695 = vadd.f32 %v571, %v694
    %s696 = scalar_lea.vmem [#allocation2], 320
    %v697 = vld [vmem:[%s696] sm:$0xff]
    %v698 = vld [vmem:[%s696 + $0x8] sm:$0xff]
    %v699 = vld [vmem:[%s696 + $0x10] sm:$0xff]
    %v700 = vld [vmem:[%s696 + $0x18] sm:$0xff]
    %v701 = vld [vmem:[%s696 + $0x20] sm:$0xff]
    %v702 = vld [vmem:[%s696 + $0x28] sm:$0xff]
    %v703 = vld [vmem:[%s696 + $0x30] sm:$0xff]
    %v704 = vld [vmem:[%s696 + $0x38] sm:$0xff]
    %s705 = scalar_lea.vmem [#allocation5], 320
    %v706 = vld [vmem:[%s705] sm:$0xff]
    %v707 = vld [vmem:[%s705 + $0x8] sm:$0xff]
    %v708 = vld [vmem:[%s705 + $0x10] sm:$0xff]
    %v709 = vld [vmem:[%s705 + $0x18] sm:$0xff]
    %v710 = vld [vmem:[%s705 + $0x20] sm:$0xff]
    %v711 = vld [vmem:[%s705 + $0x28] sm:$0xff]
    %v712 = vld [vmem:[%s705 + $0x30] sm:$0xff]
    %v713 = vld [vmem:[%s705 + $0x38] sm:$0xff]
    %s714 = scalar_lea.vmem [#allocation7], 320
    %v715 = vld [vmem:[%s714] sm:$0xff]
    %v716 = vld [vmem:[%s714 + $0x8] sm:$0xff]
    %v717 = vld [vmem:[%s714 + $0x10] sm:$0xff]
    %v718 = vld [vmem:[%s714 + $0x18] sm:$0xff]
    %v719 = vld [vmem:[%s714 + $0x20] sm:$0xff]
    %v720 = vld [vmem:[%s714 + $0x28] sm:$0xff]
    %v721 = vld [vmem:[%s714 + $0x30] sm:$0xff]
    %v722 = vld [vmem:[%s714 + $0x38] sm:$0xff]
    %s723 = scalar_lea.vmem [#allocation8], 320
    %v724 = vld [vmem:[%s723] sm:$0xff]
    %v725 = vld [vmem:[%s723 + $0x8] sm:$0xff]
    %v726 = vld [vmem:[%s723 + $0x10] sm:$0xff]
    %v727 = vld [vmem:[%s723 + $0x18] sm:$0xff]
    %v728 = vld [vmem:[%s723 + $0x20] sm:$0xff]
    %v729 = vld [vmem:[%s723 + $0x28] sm:$0xff]
    %v730 = vld [vmem:[%s723 + $0x30] sm:$0xff]
    %v731 = vld [vmem:[%s723 + $0x38] sm:$0xff]
    %v732 = vsub.f32 %v697, %v706
    %v733 = vsub.f32 %v698, %v707
    %v734 = vsub.f32 %v699, %v708
    %v735 = vsub.f32 %v700, %v709
    %v736 = vsub.f32 %v701, %v710
    %v737 = vsub.f32 %v702, %v711
    %v738 = vsub.f32 %v703, %v712
    %v739 = vsub.f32 %v704, %v713
    %v740 = vmul.f32 %v732, %v732
    %v741 = vmul.f32 %v733, %v733
    %v742 = vmul.f32 %v734, %v734
    %v743 = vmul.f32 %v735, %v735
    %v744 = vmul.f32 %v736, %v736
    %v745 = vmul.f32 %v737, %v737
    %v746 = vmul.f32 %v738, %v738
    %v747 = vmul.f32 %v739, %v739
    %vm748 = vcmp.ne.f32.partialorder %v724, -1.0
    %vm749 = vcmp.ne.f32.partialorder %v725, -1.0
    %vm750 = vcmp.ne.f32.partialorder %v726, -1.0
    %vm751 = vcmp.ne.f32.partialorder %v727, -1.0
    %vm752 = vcmp.ne.f32.partialorder %v728, -1.0
    %vm753 = vcmp.ne.f32.partialorder %v729, -1.0
    %vm754 = vcmp.ne.f32.partialorder %v730, -1.0
    %vm755 = vcmp.ne.f32.partialorder %v731, -1.0
    %v756 = vsub.f32 %v715, %v724
    %v757 = vsub.f32 %v716, %v725
    %v758 = vsub.f32 %v717, %v726
    %v759 = vsub.f32 %v718, %v727
    %v760 = vsub.f32 %v719, %v728
    %v761 = vsub.f32 %v720, %v729
    %v762 = vsub.f32 %v721, %v730
    %v763 = vsub.f32 %v722, %v731
    %v764 = vmul.f32 %v756, %v756
    %v765 = vmul.f32 %v757, %v757
    %v766 = vmul.f32 %v758, %v758
    %v767 = vmul.f32 %v759, %v759
    %v768 = vmul.f32 %v760, %v760
    %v769 = vmul.f32 %v761, %v761
    %v770 = vmul.f32 %v762, %v762
    %v771 = vmul.f32 %v763, %v763
    %v772 = vsel %vm748, %v764, 0.0
    %v773 = vsel %vm749, %v765, 0.0
    %v774 = vsel %vm750, %v766, 0.0
    %v775 = vsel %vm751, %v767, 0.0
    %v776 = vsel %vm752, %v768, 0.0
    %v777 = vsel %vm753, %v769, 0.0
    %v778 = vsel %vm754, %v770, 0.0
    %v779 = vsel %vm755, %v771, 0.0
    %v780 = vsel %vm748, 1, 0
    %v781 = vsel %vm749, 1, 0
    %v782 = vsel %vm750, 1, 0
    %v783 = vsel %vm751, 1, 0
    %v784 = vsel %vm752, 1, 0
    %v785 = vsel %vm753, 1, 0
    %v786 = vsel %vm754, 1, 0
    %v787 = vsel %vm755, 1, 0
    %v788 = vcvt.s32.f32 %v780
    %v789 = vcvt.s32.f32 %v781
    %v790 = vcvt.s32.f32 %v782
    %v791 = vcvt.s32.f32 %v783
    %v792 = vcvt.s32.f32 %v784
    %v793 = vcvt.s32.f32 %v785
    %v794 = vcvt.s32.f32 %v786
    %v795 = vcvt.s32.f32 %v787
    %v796 = vadd.f32 %v740, %v741
    %v797 = vadd.f32 %v796, %v742
    %v798 = vadd.f32 %v797, %v743
    %v799 = vadd.f32 %v798, %v744
    %v800 = vadd.f32 %v799, %v745
    %v801 = vadd.f32 %v800, %v746
    %v802 = vadd.f32 %v801, %v747
    %v803 = vadd.f32 %v679, %v802
    %v804 = vadd.f32 %v772, %v773
    %v805 = vadd.f32 %v804, %v774
    %v806 = vadd.f32 %v805, %v775
    %v807 = vadd.f32 %v806, %v776
    %v808 = vadd.f32 %v807, %v777
    %v809 = vadd.f32 %v808, %v778
    %v810 = vadd.f32 %v809, %v779
    %v811 = vadd.f32 %v687, %v810
    %v812 = vadd.f32 %v788, %v789
    %v813 = vadd.f32 %v812, %v790
    %v814 = vadd.f32 %v813, %v791
    %v815 = vadd.f32 %v814, %v792
    %v816 = vadd.f32 %v815, %v793
    %v817 = vadd.f32 %v816, %v794
    %v818 = vadd.f32 %v817, %v795
    %v819 = vadd.f32 %v695, %v818
    %s820 = scalar_lea.vmem [#allocation2], 384
    %v821 = vld [vmem:[%s820] sm:$0xff]
    %v822 = vld [vmem:[%s820 + $0x8] sm:$0xff]
    %v823 = vld [vmem:[%s820 + $0x10] sm:$0xff]
    %v824 = vld [vmem:[%s820 + $0x18] sm:$0xff]
    %v825 = vld [vmem:[%s820 + $0x20] sm:$0xff]
    %v826 = vld [vmem:[%s820 + $0x28] sm:$0xff]
    %v827 = vld [vmem:[%s820 + $0x30] sm:$0xff]
    %v828 = vld [vmem:[%s820 + $0x38] sm:$0xff]
    %s829 = scalar_lea.vmem [#allocation5], 384
    %v830 = vld [vmem:[%s829] sm:$0xff]
    %v831 = vld [vmem:[%s829 + $0x8] sm:$0xff]
    %v832 = vld [vmem:[%s829 + $0x10] sm:$0xff]
    %v833 = vld [vmem:[%s829 + $0x18] sm:$0xff]
    %v834 = vld [vmem:[%s829 + $0x20] sm:$0xff]
    %v835 = vld [vmem:[%s829 + $0x28] sm:$0xff]
    %v836 = vld [vmem:[%s829 + $0x30] sm:$0xff]
    %v837 = vld [vmem:[%s829 + $0x38] sm:$0xff]
    %s838 = scalar_lea.vmem [#allocation7], 384
    %v839 = vld [vmem:[%s838] sm:$0xff]
    %v840 = vld [vmem:[%s838 + $0x8] sm:$0xff]
    %v841 = vld [vmem:[%s838 + $0x10] sm:$0xff]
    %v842 = vld [vmem:[%s838 + $0x18] sm:$0xff]
    %v843 = vld [vmem:[%s838 + $0x20] sm:$0xff]
    %v844 = vld [vmem:[%s838 + $0x28] sm:$0xff]
    %v845 = vld [vmem:[%s838 + $0x30] sm:$0xff]
    %v846 = vld [vmem:[%s838 + $0x38] sm:$0xff]
    %s847 = scalar_lea.vmem [#allocation8], 384
    %v848 = vld [vmem:[%s847] sm:$0xff]
    %v849 = vld [vmem:[%s847 + $0x8] sm:$0xff]
    %v850 = vld [vmem:[%s847 + $0x10] sm:$0xff]
    %v851 = vld [vmem:[%s847 + $0x18] sm:$0xff]
    %v852 = vld [vmem:[%s847 + $0x20] sm:$0xff]
    %v853 = vld [vmem:[%s847 + $0x28] sm:$0xff]
    %v854 = vld [vmem:[%s847 + $0x30] sm:$0xff]
    %v855 = vld [vmem:[%s847 + $0x38] sm:$0xff]
    %v856 = vsub.f32 %v821, %v830
    %v857 = vsub.f32 %v822, %v831
    %v858 = vsub.f32 %v823, %v832
    %v859 = vsub.f32 %v824, %v833
    %v860 = vsub.f32 %v825, %v834
    %v861 = vsub.f32 %v826, %v835
    %v862 = vsub.f32 %v827, %v836
    %v863 = vsub.f32 %v828, %v837
    %v864 = vmul.f32 %v856, %v856
    %v865 = vmul.f32 %v857, %v857
    %v866 = vmul.f32 %v858, %v858
    %v867 = vmul.f32 %v859, %v859
    %v868 = vmul.f32 %v860, %v860
    %v869 = vmul.f32 %v861, %v861
    %v870 = vmul.f32 %v862, %v862
    %v871 = vmul.f32 %v863, %v863
    %vm872 = vcmp.ne.f32.partialorder %v848, -1.0
    %vm873 = vcmp.ne.f32.partialorder %v849, -1.0
    %vm874 = vcmp.ne.f32.partialorder %v850, -1.0
    %vm875 = vcmp.ne.f32.partialorder %v851, -1.0
    %vm876 = vcmp.ne.f32.partialorder %v852, -1.0
    %vm877 = vcmp.ne.f32.partialorder %v853, -1.0
    %vm878 = vcmp.ne.f32.partialorder %v854, -1.0
    %vm879 = vcmp.ne.f32.partialorder %v855, -1.0
    %v880 = vsub.f32 %v839, %v848
    %v881 = vsub.f32 %v840, %v849
    %v882 = vsub.f32 %v841, %v850
    %v883 = vsub.f32 %v842, %v851
    %v884 = vsub.f32 %v843, %v852
    %v885 = vsub.f32 %v844, %v853
    %v886 = vsub.f32 %v845, %v854
    %v887 = vsub.f32 %v846, %v855
    %v888 = vmul.f32 %v880, %v880
    %v889 = vmul.f32 %v881, %v881
    %v890 = vmul.f32 %v882, %v882
    %v891 = vmul.f32 %v883, %v883
    %v892 = vmul.f32 %v884, %v884
    %v893 = vmul.f32 %v885, %v885
    %v894 = vmul.f32 %v886, %v886
    %v895 = vmul.f32 %v887, %v887
    %v896 = vsel %vm872, %v888, 0.0
    %v897 = vsel %vm873, %v889, 0.0
    %v898 = vsel %vm874, %v890, 0.0
    %v899 = vsel %vm875, %v891, 0.0
    %v900 = vsel %vm876, %v892, 0.0
    %v901 = vsel %vm877, %v893, 0.0
    %v902 = vsel %vm878, %v894, 0.0
    %v903 = vsel %vm879, %v895, 0.0
    %v904 = vsel %vm872, 1, 0
    %v905 = vsel %vm873, 1, 0
    %v906 = vsel %vm874, 1, 0
    %v907 = vsel %vm875, 1, 0
    %v908 = vsel %vm876, 1, 0
    %v909 = vsel %vm877, 1, 0
    %v910 = vsel %vm878, 1, 0
    %v911 = vsel %vm879, 1, 0
    %v912 = vcvt.s32.f32 %v904
    %v913 = vcvt.s32.f32 %v905
    %v914 = vcvt.s32.f32 %v906
    %v915 = vcvt.s32.f32 %v907
    %v916 = vcvt.s32.f32 %v908
    %v917 = vcvt.s32.f32 %v909
    %v918 = vcvt.s32.f32 %v910
    %v919 = vcvt.s32.f32 %v911
    %v920 = vadd.f32 %v864, %v865
    %v921 = vadd.f32 %v920, %v866
    %v922 = vadd.f32 %v921, %v867
    %v923 = vadd.f32 %v922, %v868
    %v924 = vadd.f32 %v923, %v869
    %v925 = vadd.f32 %v924, %v870
    %v926 = vadd.f32 %v925, %v871
    %v927 = vadd.f32 %v803, %v926
    %v928 = vadd.f32 %v896, %v897
    %v929 = vadd.f32 %v928, %v898
    %v930 = vadd.f32 %v929, %v899
    %v931 = vadd.f32 %v930, %v900
    %v932 = vadd.f32 %v931, %v901
    %v933 = vadd.f32 %v932, %v902
    %v934 = vadd.f32 %v933, %v903
    %v935 = vadd.f32 %v811, %v934
    %v936 = vadd.f32 %v912, %v913
    %v937 = vadd.f32 %v936, %v914
    %v938 = vadd.f32 %v937, %v915
    %v939 = vadd.f32 %v938, %v916
    %v940 = vadd.f32 %v939, %v917
    %v941 = vadd.f32 %v940, %v918
    %v942 = vadd.f32 %v941, %v919
    %v943 = vadd.f32 %v819, %v942
    %s944 = scalar_lea.vmem [#allocation2], 448
    %v945 = vld [vmem:[%s944] sm:$0xff]
    %v946 = vld [vmem:[%s944 + $0x8] sm:$0xff]
    %v947 = vld [vmem:[%s944 + $0x10] sm:$0xff]
    %v948 = vld [vmem:[%s944 + $0x18] sm:$0xff]
    %v949 = vld [vmem:[%s944 + $0x20] sm:$0xff]
    %v950 = vld [vmem:[%s944 + $0x28] sm:$0xff]
    %v951 = vld [vmem:[%s944 + $0x30] sm:$0xff]
    %v952 = vld [vmem:[%s944 + $0x38] sm:$0xff]
    %s953 = scalar_lea.vmem [#allocation5], 448
    %v954 = vld [vmem:[%s953] sm:$0xff]
    %v955 = vld [vmem:[%s953 + $0x8] sm:$0xff]
    %v956 = vld [vmem:[%s953 + $0x10] sm:$0xff]
    %v957 = vld [vmem:[%s953 + $0x18] sm:$0xff]
    %v958 = vld [vmem:[%s953 + $0x20] sm:$0xff]
    %v959 = vld [vmem:[%s953 + $0x28] sm:$0xff]
    %v960 = vld [vmem:[%s953 + $0x30] sm:$0xff]
    %v961 = vld [vmem:[%s953 + $0x38] sm:$0xff]
    %s962 = scalar_lea.vmem [#allocation7], 448
    %v963 = vld [vmem:[%s962] sm:$0xff]
    %v964 = vld [vmem:[%s962 + $0x8] sm:$0xff]
    %v965 = vld [vmem:[%s962 + $0x10] sm:$0xff]
    %v966 = vld [vmem:[%s962 + $0x18] sm:$0xff]
    %v967 = vld [vmem:[%s962 + $0x20] sm:$0xff]
    %v968 = vld [vmem:[%s962 + $0x28] sm:$0xff]
    %v969 = vld [vmem:[%s962 + $0x30] sm:$0xff]
    %v970 = vld [vmem:[%s962 + $0x38] sm:$0xff]
    %s971 = scalar_lea.vmem [#allocation8], 448
    %v972 = vld [vmem:[%s971] sm:$0xff]
    %v973 = vld [vmem:[%s971 + $0x8] sm:$0xff]
    %v974 = vld [vmem:[%s971 + $0x10] sm:$0xff]
    %v975 = vld [vmem:[%s971 + $0x18] sm:$0xff]
    %v976 = vld [vmem:[%s971 + $0x20] sm:$0xff]
    %v977 = vld [vmem:[%s971 + $0x28] sm:$0xff]
    %v978 = vld [vmem:[%s971 + $0x30] sm:$0xff]
    %v979 = vld [vmem:[%s971 + $0x38] sm:$0xff]
    %v980 = vsub.f32 %v945, %v954
    %v981 = vsub.f32 %v946, %v955
    %v982 = vsub.f32 %v947, %v956
    %v983 = vsub.f32 %v948, %v957
    %v984 = vsub.f32 %v949, %v958
    %v985 = vsub.f32 %v950, %v959
    %v986 = vsub.f32 %v951, %v960
    %v987 = vsub.f32 %v952, %v961
    %v988 = vmul.f32 %v980, %v980
    %v989 = vmul.f32 %v981, %v981
    %v990 = vmul.f32 %v982, %v982
    %v991 = vmul.f32 %v983, %v983
    %v992 = vmul.f32 %v984, %v984
    %v993 = vmul.f32 %v985, %v985
    %v994 = vmul.f32 %v986, %v986
    %v995 = vmul.f32 %v987, %v987
    %vm996 = vcmp.ne.f32.partialorder %v972, -1.0
    %vm997 = vcmp.ne.f32.partialorder %v973, -1.0
    %vm998 = vcmp.ne.f32.partialorder %v974, -1.0
    %vm999 = vcmp.ne.f32.partialorder %v975, -1.0
    %vm1000 = vcmp.ne.f32.partialorder %v976, -1.0
    %vm1001 = vcmp.ne.f32.partialorder %v977, -1.0
    %vm1002 = vcmp.ne.f32.partialorder %v978, -1.0
    %vm1003 = vcmp.ne.f32.partialorder %v979, -1.0
    %v1004 = vsub.f32 %v963, %v972
    %v1005 = vsub.f32 %v964, %v973
    %v1006 = vsub.f32 %v965, %v974
    %v1007 = vsub.f32 %v966, %v975
    %v1008 = vsub.f32 %v967, %v976
    %v1009 = vsub.f32 %v968, %v977
    %v1010 = vsub.f32 %v969, %v978
    %v1011 = vsub.f32 %v970, %v979
    %v1012 = vmul.f32 %v1004, %v1004
    %v1013 = vmul.f32 %v1005, %v1005
    %v1014 = vmul.f32 %v1006, %v1006
    %v1015 = vmul.f32 %v1007, %v1007
    %v1016 = vmul.f32 %v1008, %v1008
    %v1017 = vmul.f32 %v1009, %v1009
    %v1018 = vmul.f32 %v1010, %v1010
    %v1019 = vmul.f32 %v1011, %v1011
    %v1020 = vsel %vm996, %v1012, 0.0
    %v1021 = vsel %vm997, %v1013, 0.0
    %v1022 = vsel %vm998, %v1014, 0.0
    %v1023 = vsel %vm999, %v1015, 0.0
    %v1024 = vsel %vm1000, %v1016, 0.0
    %v1025 = vsel %vm1001, %v1017, 0.0
    %v1026 = vsel %vm1002, %v1018, 0.0
    %v1027 = vsel %vm1003, %v1019, 0.0
    %v1028 = vsel %vm996, 1, 0
    %v1029 = vsel %vm997, 1, 0
    %v1030 = vsel %vm998, 1, 0
    %v1031 = vsel %vm999, 1, 0
    %v1032 = vsel %vm1000, 1, 0
    %v1033 = vsel %vm1001, 1, 0
    %v1034 = vsel %vm1002, 1, 0
    %v1035 = vsel %vm1003, 1, 0
    %v1036 = vcvt.s32.f32 %v1028
    %v1037 = vcvt.s32.f32 %v1029
    %v1038 = vcvt.s32.f32 %v1030
    %v1039 = vcvt.s32.f32 %v1031
    %v1040 = vcvt.s32.f32 %v1032
    %v1041 = vcvt.s32.f32 %v1033
    %v1042 = vcvt.s32.f32 %v1034
    %v1043 = vcvt.s32.f32 %v1035
    %v1044 = vadd.f32 %v988, %v989
    %v1045 = vadd.f32 %v1044, %v990
    %v1046 = vadd.f32 %v1045, %v991
    %v1047 = vadd.f32 %v1046, %v992
    %v1048 = vadd.f32 %v1047, %v993
    %v1049 = vadd.f32 %v1048, %v994
    %v1050 = vadd.f32 %v1049, %v995
    %v1051 = vadd.f32 %v927, %v1050
    %v1052 = vadd.f32 %v1020, %v1021
    %v1053 = vadd.f32 %v1052, %v1022
    %v1054 = vadd.f32 %v1053, %v1023
    %v1055 = vadd.f32 %v1054, %v1024
    %v1056 = vadd.f32 %v1055, %v1025
    %v1057 = vadd.f32 %v1056, %v1026
    %v1058 = vadd.f32 %v1057, %v1027
    %v1059 = vadd.f32 %v935, %v1058
    %v1060 = vadd.f32 %v1036, %v1037
    %v1061 = vadd.f32 %v1060, %v1038
    %v1062 = vadd.f32 %v1061, %v1039
    %v1063 = vadd.f32 %v1062, %v1040
    %v1064 = vadd.f32 %v1063, %v1041
    %v1065 = vadd.f32 %v1064, %v1042
    %v1066 = vadd.f32 %v1065, %v1043
    %v1067 = vadd.f32 %v943, %v1066
    %s1068 = scalar_lea.vmem [#allocation2], 512
    %v1069 = vld [vmem:[%s1068] sm:$0xff]
    %v1070 = vld [vmem:[%s1068 + $0x8] sm:$0xff]
    %v1071 = vld [vmem:[%s1068 + $0x10] sm:$0xff]
    %v1072 = vld [vmem:[%s1068 + $0x18] sm:$0xff]
    %v1073 = vld [vmem:[%s1068 + $0x20] sm:$0xff]
    %v1074 = vld [vmem:[%s1068 + $0x28] sm:$0xff]
    %v1075 = vld [vmem:[%s1068 + $0x30] sm:$0xff]
    %v1076 = vld [vmem:[%s1068 + $0x38] sm:$0xff]
    %s1077 = scalar_lea.vmem [#allocation5], 512
    %v1078 = vld [vmem:[%s1077] sm:$0xff]
    %v1079 = vld [vmem:[%s1077 + $0x8] sm:$0xff]
    %v1080 = vld [vmem:[%s1077 + $0x10] sm:$0xff]
    %v1081 = vld [vmem:[%s1077 + $0x18] sm:$0xff]
    %v1082 = vld [vmem:[%s1077 + $0x20] sm:$0xff]
    %v1083 = vld [vmem:[%s1077 + $0x28] sm:$0xff]
    %v1084 = vld [vmem:[%s1077 + $0x30] sm:$0xff]
    %v1085 = vld [vmem:[%s1077 + $0x38] sm:$0xff]
    %s1086 = scalar_lea.vmem [#allocation7], 512
    %v1087 = vld [vmem:[%s1086] sm:$0xff]
    %v1088 = vld [vmem:[%s1086 + $0x8] sm:$0xff]
    %v1089 = vld [vmem:[%s1086 + $0x10] sm:$0xff]
    %v1090 = vld [vmem:[%s1086 + $0x18] sm:$0xff]
    %v1091 = vld [vmem:[%s1086 + $0x20] sm:$0xff]
    %v1092 = vld [vmem:[%s1086 + $0x28] sm:$0xff]
    %v1093 = vld [vmem:[%s1086 + $0x30] sm:$0xff]
    %v1094 = vld [vmem:[%s1086 + $0x38] sm:$0xff]
    %s1095 = scalar_lea.vmem [#allocation8], 512
    %v1096 = vld [vmem:[%s1095] sm:$0xff]
    %v1097 = vld [vmem:[%s1095 + $0x8] sm:$0xff]
    %v1098 = vld [vmem:[%s1095 + $0x10] sm:$0xff]
    %v1099 = vld [vmem:[%s1095 + $0x18] sm:$0xff]
    %v1100 = vld [vmem:[%s1095 + $0x20] sm:$0xff]
    %v1101 = vld [vmem:[%s1095 + $0x28] sm:$0xff]
    %v1102 = vld [vmem:[%s1095 + $0x30] sm:$0xff]
    %v1103 = vld [vmem:[%s1095 + $0x38] sm:$0xff]
    %v1104 = vsub.f32 %v1069, %v1078
    %v1105 = vsub.f32 %v1070, %v1079
    %v1106 = vsub.f32 %v1071, %v1080
    %v1107 = vsub.f32 %v1072, %v1081
    %v1108 = vsub.f32 %v1073, %v1082
    %v1109 = vsub.f32 %v1074, %v1083
    %v1110 = vsub.f32 %v1075, %v1084
    %v1111 = vsub.f32 %v1076, %v1085
    %v1112 = vmul.f32 %v1104, %v1104
    %v1113 = vmul.f32 %v1105, %v1105
    %v1114 = vmul.f32 %v1106, %v1106
    %v1115 = vmul.f32 %v1107, %v1107
    %v1116 = vmul.f32 %v1108, %v1108
    %v1117 = vmul.f32 %v1109, %v1109
    %v1118 = vmul.f32 %v1110, %v1110
    %v1119 = vmul.f32 %v1111, %v1111
    %vm1120 = vcmp.ne.f32.partialorder %v1096, -1.0
    %vm1121 = vcmp.ne.f32.partialorder %v1097, -1.0
    %vm1122 = vcmp.ne.f32.partialorder %v1098, -1.0
    %vm1123 = vcmp.ne.f32.partialorder %v1099, -1.0
    %vm1124 = vcmp.ne.f32.partialorder %v1100, -1.0
    %vm1125 = vcmp.ne.f32.partialorder %v1101, -1.0
    %vm1126 = vcmp.ne.f32.partialorder %v1102, -1.0
    %vm1127 = vcmp.ne.f32.partialorder %v1103, -1.0
    %v1128 = vsub.f32 %v1087, %v1096
    %v1129 = vsub.f32 %v1088, %v1097
    %v1130 = vsub.f32 %v1089, %v1098
    %v1131 = vsub.f32 %v1090, %v1099
    %v1132 = vsub.f32 %v1091, %v1100
    %v1133 = vsub.f32 %v1092, %v1101
    %v1134 = vsub.f32 %v1093, %v1102
    %v1135 = vsub.f32 %v1094, %v1103
    %v1136 = vmul.f32 %v1128, %v1128
    %v1137 = vmul.f32 %v1129, %v1129
    %v1138 = vmul.f32 %v1130, %v1130
    %v1139 = vmul.f32 %v1131, %v1131
    %v1140 = vmul.f32 %v1132, %v1132
    %v1141 = vmul.f32 %v1133, %v1133
    %v1142 = vmul.f32 %v1134, %v1134
    %v1143 = vmul.f32 %v1135, %v1135
    %v1144 = vsel %vm1120, %v1136, 0.0
    %v1145 = vsel %vm1121, %v1137, 0.0
    %v1146 = vsel %vm1122, %v1138, 0.0
    %v1147 = vsel %vm1123, %v1139, 0.0
    %v1148 = vsel %vm1124, %v1140, 0.0
    %v1149 = vsel %vm1125, %v1141, 0.0
    %v1150 = vsel %vm1126, %v1142, 0.0
    %v1151 = vsel %vm1127, %v1143, 0.0
    %v1152 = vsel %vm1120, 1, 0
    %v1153 = vsel %vm1121, 1, 0
    %v1154 = vsel %vm1122, 1, 0
    %v1155 = vsel %vm1123, 1, 0
    %v1156 = vsel %vm1124, 1, 0
    %v1157 = vsel %vm1125, 1, 0
    %v1158 = vsel %vm1126, 1, 0
    %v1159 = vsel %vm1127, 1, 0
    %v1160 = vcvt.s32.f32 %v1152
    %v1161 = vcvt.s32.f32 %v1153
    %v1162 = vcvt.s32.f32 %v1154
    %v1163 = vcvt.s32.f32 %v1155
    %v1164 = vcvt.s32.f32 %v1156
    %v1165 = vcvt.s32.f32 %v1157
    %v1166 = vcvt.s32.f32 %v1158
    %v1167 = vcvt.s32.f32 %v1159
    %v1168 = vadd.f32 %v1112, %v1113
    %v1169 = vadd.f32 %v1168, %v1114
    %v1170 = vadd.f32 %v1169, %v1115
    %v1171 = vadd.f32 %v1170, %v1116
    %v1172 = vadd.f32 %v1171, %v1117
    %v1173 = vadd.f32 %v1172, %v1118
    %v1174 = vadd.f32 %v1173, %v1119
    %v1175 = vadd.f32 %v1051, %v1174
    %v1176 = vadd.f32 %v1144, %v1145
    %v1177 = vadd.f32 %v1176, %v1146
    %v1178 = vadd.f32 %v1177, %v1147
    %v1179 = vadd.f32 %v1178, %v1148
    %v1180 = vadd.f32 %v1179, %v1149
    %v1181 = vadd.f32 %v1180, %v1150
    %v1182 = vadd.f32 %v1181, %v1151
    %v1183 = vadd.f32 %v1059, %v1182
    %v1184 = vadd.f32 %v1160, %v1161
    %v1185 = vadd.f32 %v1184, %v1162
    %v1186 = vadd.f32 %v1185, %v1163
    %v1187 = vadd.f32 %v1186, %v1164
    %v1188 = vadd.f32 %v1187, %v1165
    %v1189 = vadd.f32 %v1188, %v1166
    %v1190 = vadd.f32 %v1189, %v1167
    %v1191 = vadd.f32 %v1067, %v1190
    %s1192 = scalar_lea.vmem [#allocation2], 576
    %v1193 = vld [vmem:[%s1192] sm:$0xff]
    %v1194 = vld [vmem:[%s1192 + $0x8] sm:$0xff]
    %v1195 = vld [vmem:[%s1192 + $0x10] sm:$0xff]
    %v1196 = vld [vmem:[%s1192 + $0x18] sm:$0xff]
    %v1197 = vld [vmem:[%s1192 + $0x20] sm:$0xff]
    %v1198 = vld [vmem:[%s1192 + $0x28] sm:$0xff]
    %v1199 = vld [vmem:[%s1192 + $0x30] sm:$0xff]
    %v1200 = vld [vmem:[%s1192 + $0x38] sm:$0xff]
    %s1201 = scalar_lea.vmem [#allocation5], 576
    %v1202 = vld [vmem:[%s1201] sm:$0xff]
    %v1203 = vld [vmem:[%s1201 + $0x8] sm:$0xff]
    %v1204 = vld [vmem:[%s1201 + $0x10] sm:$0xff]
    %v1205 = vld [vmem:[%s1201 + $0x18] sm:$0xff]
    %v1206 = vld [vmem:[%s1201 + $0x20] sm:$0xff]
    %v1207 = vld [vmem:[%s1201 + $0x28] sm:$0xff]
    %v1208 = vld [vmem:[%s1201 + $0x30] sm:$0xff]
    %v1209 = vld [vmem:[%s1201 + $0x38] sm:$0xff]
    %s1210 = scalar_lea.vmem [#allocation7], 576
    %v1211 = vld [vmem:[%s1210] sm:$0xff]
    %v1212 = vld [vmem:[%s1210 + $0x8] sm:$0xff]
    %v1213 = vld [vmem:[%s1210 + $0x10] sm:$0xff]
    %v1214 = vld [vmem:[%s1210 + $0x18] sm:$0xff]
    %v1215 = vld [vmem:[%s1210 + $0x20] sm:$0xff]
    %v1216 = vld [vmem:[%s1210 + $0x28] sm:$0xff]
    %v1217 = vld [vmem:[%s1210 + $0x30] sm:$0xff]
    %v1218 = vld [vmem:[%s1210 + $0x38] sm:$0xff]
    %s1219 = scalar_lea.vmem [#allocation8], 576
    %v1220 = vld [vmem:[%s1219] sm:$0xff]
    %v1221 = vld [vmem:[%s1219 + $0x8] sm:$0xff]
    %v1222 = vld [vmem:[%s1219 + $0x10] sm:$0xff]
    %v1223 = vld [vmem:[%s1219 + $0x18] sm:$0xff]
    %v1224 = vld [vmem:[%s1219 + $0x20] sm:$0xff]
    %v1225 = vld [vmem:[%s1219 + $0x28] sm:$0xff]
    %v1226 = vld [vmem:[%s1219 + $0x30] sm:$0xff]
    %v1227 = vld [vmem:[%s1219 + $0x38] sm:$0xff]
    %v1228 = vsub.f32 %v1193, %v1202
    %v1229 = vsub.f32 %v1194, %v1203
    %v1230 = vsub.f32 %v1195, %v1204
    %v1231 = vsub.f32 %v1196, %v1205
    %v1232 = vsub.f32 %v1197, %v1206
    %v1233 = vsub.f32 %v1198, %v1207
    %v1234 = vsub.f32 %v1199, %v1208
    %v1235 = vsub.f32 %v1200, %v1209
    %v1236 = vmul.f32 %v1228, %v1228
    %v1237 = vmul.f32 %v1229, %v1229
    %v1238 = vmul.f32 %v1230, %v1230
    %v1239 = vmul.f32 %v1231, %v1231
    %v1240 = vmul.f32 %v1232, %v1232
    %v1241 = vmul.f32 %v1233, %v1233
    %v1242 = vmul.f32 %v1234, %v1234
    %v1243 = vmul.f32 %v1235, %v1235
    %vm1244 = vcmp.ne.f32.partialorder %v1220, -1.0
    %vm1245 = vcmp.ne.f32.partialorder %v1221, -1.0
    %vm1246 = vcmp.ne.f32.partialorder %v1222, -1.0
    %vm1247 = vcmp.ne.f32.partialorder %v1223, -1.0
    %vm1248 = vcmp.ne.f32.partialorder %v1224, -1.0
    %vm1249 = vcmp.ne.f32.partialorder %v1225, -1.0
    %vm1250 = vcmp.ne.f32.partialorder %v1226, -1.0
    %vm1251 = vcmp.ne.f32.partialorder %v1227, -1.0
    %v1252 = vsub.f32 %v1211, %v1220
    %v1253 = vsub.f32 %v1212, %v1221
    %v1254 = vsub.f32 %v1213, %v1222
    %v1255 = vsub.f32 %v1214, %v1223
    %v1256 = vsub.f32 %v1215, %v1224
    %v1257 = vsub.f32 %v1216, %v1225
    %v1258 = vsub.f32 %v1217, %v1226
    %v1259 = vsub.f32 %v1218, %v1227
    %v1260 = vmul.f32 %v1252, %v1252
    %v1261 = vmul.f32 %v1253, %v1253
    %v1262 = vmul.f32 %v1254, %v1254
    %v1263 = vmul.f32 %v1255, %v1255
    %v1264 = vmul.f32 %v1256, %v1256
    %v1265 = vmul.f32 %v1257, %v1257
    %v1266 = vmul.f32 %v1258, %v1258
    %v1267 = vmul.f32 %v1259, %v1259
    %v1268 = vsel %vm1244, %v1260, 0.0
    %v1269 = vsel %vm1245, %v1261, 0.0
    %v1270 = vsel %vm1246, %v1262, 0.0
    %v1271 = vsel %vm1247, %v1263, 0.0
    %v1272 = vsel %vm1248, %v1264, 0.0
    %v1273 = vsel %vm1249, %v1265, 0.0
    %v1274 = vsel %vm1250, %v1266, 0.0
    %v1275 = vsel %vm1251, %v1267, 0.0
    %v1276 = vsel %vm1244, 1, 0
    %v1277 = vsel %vm1245, 1, 0
    %v1278 = vsel %vm1246, 1, 0
    %v1279 = vsel %vm1247, 1, 0
    %v1280 = vsel %vm1248, 1, 0
    %v1281 = vsel %vm1249, 1, 0
    %v1282 = vsel %vm1250, 1, 0
    %v1283 = vsel %vm1251, 1, 0
    %v1284 = vcvt.s32.f32 %v1276
    %v1285 = vcvt.s32.f32 %v1277
    %v1286 = vcvt.s32.f32 %v1278
    %v1287 = vcvt.s32.f32 %v1279
    %v1288 = vcvt.s32.f32 %v1280
    %v1289 = vcvt.s32.f32 %v1281
    %v1290 = vcvt.s32.f32 %v1282
    %v1291 = vcvt.s32.f32 %v1283
    %v1292 = vadd.f32 %v1236, %v1237
    %v1293 = vadd.f32 %v1292, %v1238
    %v1294 = vadd.f32 %v1293, %v1239
    %v1295 = vadd.f32 %v1294, %v1240
    %v1296 = vadd.f32 %v1295, %v1241
    %v1297 = vadd.f32 %v1296, %v1242
    %v1298 = vadd.f32 %v1297, %v1243
    %v1299 = vadd.f32 %v1175, %v1298
    %v1300 = vadd.f32 %v1268, %v1269
    %v1301 = vadd.f32 %v1300, %v1270
    %v1302 = vadd.f32 %v1301, %v1271
    %v1303 = vadd.f32 %v1302, %v1272
    %v1304 = vadd.f32 %v1303, %v1273
    %v1305 = vadd.f32 %v1304, %v1274
    %v1306 = vadd.f32 %v1305, %v1275
    %v1307 = vadd.f32 %v1183, %v1306
    %v1308 = vadd.f32 %v1284, %v1285
    %v1309 = vadd.f32 %v1308, %v1286
    %v1310 = vadd.f32 %v1309, %v1287
    %v1311 = vadd.f32 %v1310, %v1288
    %v1312 = vadd.f32 %v1311, %v1289
    %v1313 = vadd.f32 %v1312, %v1290
    %v1314 = vadd.f32 %v1313, %v1291
    %v1315 = vadd.f32 %v1191, %v1314
    %s1316 = scalar_lea.vmem [#allocation2], 640
    %v1317 = vld [vmem:[%s1316] sm:$0xff]
    %v1318 = vld [vmem:[%s1316 + $0x8] sm:$0xff]
    %v1319 = vld [vmem:[%s1316 + $0x10] sm:$0xff]
    %v1320 = vld [vmem:[%s1316 + $0x18] sm:$0xff]
    %v1321 = vld [vmem:[%s1316 + $0x20] sm:$0xff]
    %v1322 = vld [vmem:[%s1316 + $0x28] sm:$0xff]
    %v1323 = vld [vmem:[%s1316 + $0x30] sm:$0xff]
    %v1324 = vld [vmem:[%s1316 + $0x38] sm:$0xff]
    %s1325 = scalar_lea.vmem [#allocation5], 640
    %v1326 = vld [vmem:[%s1325] sm:$0xff]
    %v1327 = vld [vmem:[%s1325 + $0x8] sm:$0xff]
    %v1328 = vld [vmem:[%s1325 + $0x10] sm:$0xff]
    %v1329 = vld [vmem:[%s1325 + $0x18] sm:$0xff]
    %v1330 = vld [vmem:[%s1325 + $0x20] sm:$0xff]
    %v1331 = vld [vmem:[%s1325 + $0x28] sm:$0xff]
    %v1332 = vld [vmem:[%s1325 + $0x30] sm:$0xff]
    %v1333 = vld [vmem:[%s1325 + $0x38] sm:$0xff]
    %s1334 = scalar_lea.vmem [#allocation7], 640
    %v1335 = vld [vmem:[%s1334] sm:$0xff]
    %v1336 = vld [vmem:[%s1334 + $0x8] sm:$0xff]
    %v1337 = vld [vmem:[%s1334 + $0x10] sm:$0xff]
    %v1338 = vld [vmem:[%s1334 + $0x18] sm:$0xff]
    %v1339 = vld [vmem:[%s1334 + $0x20] sm:$0xff]
    %v1340 = vld [vmem:[%s1334 + $0x28] sm:$0xff]
    %v1341 = vld [vmem:[%s1334 + $0x30] sm:$0xff]
    %v1342 = vld [vmem:[%s1334 + $0x38] sm:$0xff]
    %s1343 = scalar_lea.vmem [#allocation8], 640
    %v1344 = vld [vmem:[%s1343] sm:$0xff]
    %v1345 = vld [vmem:[%s1343 + $0x8] sm:$0xff]
    %v1346 = vld [vmem:[%s1343 + $0x10] sm:$0xff]
    %v1347 = vld [vmem:[%s1343 + $0x18] sm:$0xff]
    %v1348 = vld [vmem:[%s1343 + $0x20] sm:$0xff]
    %v1349 = vld [vmem:[%s1343 + $0x28] sm:$0xff]
    %v1350 = vld [vmem:[%s1343 + $0x30] sm:$0xff]
    %v1351 = vld [vmem:[%s1343 + $0x38] sm:$0xff]
    %v1352 = vsub.f32 %v1317, %v1326
    %v1353 = vsub.f32 %v1318, %v1327
    %v1354 = vsub.f32 %v1319, %v1328
    %v1355 = vsub.f32 %v1320, %v1329
    %v1356 = vsub.f32 %v1321, %v1330
    %v1357 = vsub.f32 %v1322, %v1331
    %v1358 = vsub.f32 %v1323, %v1332
    %v1359 = vsub.f32 %v1324, %v1333
    %v1360 = vmul.f32 %v1352, %v1352
    %v1361 = vmul.f32 %v1353, %v1353
    %v1362 = vmul.f32 %v1354, %v1354
    %v1363 = vmul.f32 %v1355, %v1355
    %v1364 = vmul.f32 %v1356, %v1356
    %v1365 = vmul.f32 %v1357, %v1357
    %v1366 = vmul.f32 %v1358, %v1358
    %v1367 = vmul.f32 %v1359, %v1359
    %vm1368 = vcmp.ne.f32.partialorder %v1344, -1.0
    %vm1369 = vcmp.ne.f32.partialorder %v1345, -1.0
    %vm1370 = vcmp.ne.f32.partialorder %v1346, -1.0
    %vm1371 = vcmp.ne.f32.partialorder %v1347, -1.0
    %vm1372 = vcmp.ne.f32.partialorder %v1348, -1.0
    %vm1373 = vcmp.ne.f32.partialorder %v1349, -1.0
    %vm1374 = vcmp.ne.f32.partialorder %v1350, -1.0
    %vm1375 = vcmp.ne.f32.partialorder %v1351, -1.0
    %v1376 = vsub.f32 %v1335, %v1344
    %v1377 = vsub.f32 %v1336, %v1345
    %v1378 = vsub.f32 %v1337, %v1346
    %v1379 = vsub.f32 %v1338, %v1347
    %v1380 = vsub.f32 %v1339, %v1348
    %v1381 = vsub.f32 %v1340, %v1349
    %v1382 = vsub.f32 %v1341, %v1350
    %v1383 = vsub.f32 %v1342, %v1351
    %v1384 = vmul.f32 %v1376, %v1376
    %v1385 = vmul.f32 %v1377, %v1377
    %v1386 = vmul.f32 %v1378, %v1378
    %v1387 = vmul.f32 %v1379, %v1379
    %v1388 = vmul.f32 %v1380, %v1380
    %v1389 = vmul.f32 %v1381, %v1381
    %v1390 = vmul.f32 %v1382, %v1382
    %v1391 = vmul.f32 %v1383, %v1383
    %v1392 = vsel %vm1368, %v1384, 0.0
    %v1393 = vsel %vm1369, %v1385, 0.0
    %v1394 = vsel %vm1370, %v1386, 0.0
    %v1395 = vsel %vm1371, %v1387, 0.0
    %v1396 = vsel %vm1372, %v1388, 0.0
    %v1397 = vsel %vm1373, %v1389, 0.0
    %v1398 = vsel %vm1374, %v1390, 0.0
    %v1399 = vsel %vm1375, %v1391, 0.0
    %v1400 = vsel %vm1368, 1, 0
    %v1401 = vsel %vm1369, 1, 0
    %v1402 = vsel %vm1370, 1, 0
    %v1403 = vsel %vm1371, 1, 0
    %v1404 = vsel %vm1372, 1, 0
    %v1405 = vsel %vm1373, 1, 0
    %v1406 = vsel %vm1374, 1, 0
    %v1407 = vsel %vm1375, 1, 0
    %v1408 = vcvt.s32.f32 %v1400
    %v1409 = vcvt.s32.f32 %v1401
    %v1410 = vcvt.s32.f32 %v1402
    %v1411 = vcvt.s32.f32 %v1403
    %v1412 = vcvt.s32.f32 %v1404
    %v1413 = vcvt.s32.f32 %v1405
    %v1414 = vcvt.s32.f32 %v1406
    %v1415 = vcvt.s32.f32 %v1407
    %v1416 = vadd.f32 %v1360, %v1361
    %v1417 = vadd.f32 %v1416, %v1362
    %v1418 = vadd.f32 %v1417, %v1363
    %v1419 = vadd.f32 %v1418, %v1364
    %v1420 = vadd.f32 %v1419, %v1365
    %v1421 = vadd.f32 %v1420, %v1366
    %v1422 = vadd.f32 %v1421, %v1367
    %v1423 = vadd.f32 %v1299, %v1422
    %v1424 = vadd.f32 %v1392, %v1393
    %v1425 = vadd.f32 %v1424, %v1394
    %v1426 = vadd.f32 %v1425, %v1395
    %v1427 = vadd.f32 %v1426, %v1396
    %v1428 = vadd.f32 %v1427, %v1397
    %v1429 = vadd.f32 %v1428, %v1398
    %v1430 = vadd.f32 %v1429, %v1399
    %v1431 = vadd.f32 %v1307, %v1430
    %v1432 = vadd.f32 %v1408, %v1409
    %v1433 = vadd.f32 %v1432, %v1410
    %v1434 = vadd.f32 %v1433, %v1411
    %v1435 = vadd.f32 %v1434, %v1412
    %v1436 = vadd.f32 %v1435, %v1413
    %v1437 = vadd.f32 %v1436, %v1414
    %v1438 = vadd.f32 %v1437, %v1415
    %v1439 = vadd.f32 %v1315, %v1438
    %s1440 = scalar_lea.vmem [#allocation2], 704
    %v1441 = vld [vmem:[%s1440] sm:$0xff]
    %v1442 = vld [vmem:[%s1440 + $0x8] sm:$0xff]
    %v1443 = vld [vmem:[%s1440 + $0x10] sm:$0xff]
    %v1444 = vld [vmem:[%s1440 + $0x18] sm:$0xff]
    %v1445 = vld [vmem:[%s1440 + $0x20] sm:$0xff]
    %v1446 = vld [vmem:[%s1440 + $0x28] sm:$0xff]
    %v1447 = vld [vmem:[%s1440 + $0x30] sm:$0xff]
    %v1448 = vld [vmem:[%s1440 + $0x38] sm:$0xff]
    %s1449 = scalar_lea.vmem [#allocation5], 704
    %v1450 = vld [vmem:[%s1449] sm:$0xff]
    %v1451 = vld [vmem:[%s1449 + $0x8] sm:$0xff]
    %v1452 = vld [vmem:[%s1449 + $0x10] sm:$0xff]
    %v1453 = vld [vmem:[%s1449 + $0x18] sm:$0xff]
    %v1454 = vld [vmem:[%s1449 + $0x20] sm:$0xff]
    %v1455 = vld [vmem:[%s1449 + $0x28] sm:$0xff]
    %v1456 = vld [vmem:[%s1449 + $0x30] sm:$0xff]
    %v1457 = vld [vmem:[%s1449 + $0x38] sm:$0xff]
    %s1458 = scalar_lea.vmem [#allocation7], 704
    %v1459 = vld [vmem:[%s1458] sm:$0xff]
    %v1460 = vld [vmem:[%s1458 + $0x8] sm:$0xff]
    %v1461 = vld [vmem:[%s1458 + $0x10] sm:$0xff]
    %v1462 = vld [vmem:[%s1458 + $0x18] sm:$0xff]
    %v1463 = vld [vmem:[%s1458 + $0x20] sm:$0xff]
    %v1464 = vld [vmem:[%s1458 + $0x28] sm:$0xff]
    %v1465 = vld [vmem:[%s1458 + $0x30] sm:$0xff]
    %v1466 = vld [vmem:[%s1458 + $0x38] sm:$0xff]
    %s1467 = scalar_lea.vmem [#allocation8], 704
    %v1468 = vld [vmem:[%s1467] sm:$0xff]
    %v1469 = vld [vmem:[%s1467 + $0x8] sm:$0xff]
    %v1470 = vld [vmem:[%s1467 + $0x10] sm:$0xff]
    %v1471 = vld [vmem:[%s1467 + $0x18] sm:$0xff]
    %v1472 = vld [vmem:[%s1467 + $0x20] sm:$0xff]
    %v1473 = vld [vmem:[%s1467 + $0x28] sm:$0xff]
    %v1474 = vld [vmem:[%s1467 + $0x30] sm:$0xff]
    %v1475 = vld [vmem:[%s1467 + $0x38] sm:$0xff]
    %v1476 = vsub.f32 %v1441, %v1450
    %v1477 = vsub.f32 %v1442, %v1451
    %v1478 = vsub.f32 %v1443, %v1452
    %v1479 = vsub.f32 %v1444, %v1453
    %v1480 = vsub.f32 %v1445, %v1454
    %v1481 = vsub.f32 %v1446, %v1455
    %v1482 = vsub.f32 %v1447, %v1456
    %v1483 = vsub.f32 %v1448, %v1457
    %v1484 = vmul.f32 %v1476, %v1476
    %v1485 = vmul.f32 %v1477, %v1477
    %v1486 = vmul.f32 %v1478, %v1478
    %v1487 = vmul.f32 %v1479, %v1479
    %v1488 = vmul.f32 %v1480, %v1480
    %v1489 = vmul.f32 %v1481, %v1481
    %v1490 = vmul.f32 %v1482, %v1482
    %v1491 = vmul.f32 %v1483, %v1483
    %vm1492 = vcmp.ne.f32.partialorder %v1468, -1.0
    %vm1493 = vcmp.ne.f32.partialorder %v1469, -1.0
    %vm1494 = vcmp.ne.f32.partialorder %v1470, -1.0
    %vm1495 = vcmp.ne.f32.partialorder %v1471, -1.0
    %vm1496 = vcmp.ne.f32.partialorder %v1472, -1.0
    %vm1497 = vcmp.ne.f32.partialorder %v1473, -1.0
    %vm1498 = vcmp.ne.f32.partialorder %v1474, -1.0
    %vm1499 = vcmp.ne.f32.partialorder %v1475, -1.0
    %v1500 = vsub.f32 %v1459, %v1468
    %v1501 = vsub.f32 %v1460, %v1469
    %v1502 = vsub.f32 %v1461, %v1470
    %v1503 = vsub.f32 %v1462, %v1471
    %v1504 = vsub.f32 %v1463, %v1472
    %v1505 = vsub.f32 %v1464, %v1473
    %v1506 = vsub.f32 %v1465, %v1474
    %v1507 = vsub.f32 %v1466, %v1475
    %v1508 = vmul.f32 %v1500, %v1500
    %v1509 = vmul.f32 %v1501, %v1501
    %v1510 = vmul.f32 %v1502, %v1502
    %v1511 = vmul.f32 %v1503, %v1503
    %v1512 = vmul.f32 %v1504, %v1504
    %v1513 = vmul.f32 %v1505, %v1505
    %v1514 = vmul.f32 %v1506, %v1506
    %v1515 = vmul.f32 %v1507, %v1507
    %v1516 = vsel %vm1492, %v1508, 0.0
    %v1517 = vsel %vm1493, %v1509, 0.0
    %v1518 = vsel %vm1494, %v1510, 0.0
    %v1519 = vsel %vm1495, %v1511, 0.0
    %v1520 = vsel %vm1496, %v1512, 0.0
    %v1521 = vsel %vm1497, %v1513, 0.0
    %v1522 = vsel %vm1498, %v1514, 0.0
    %v1523 = vsel %vm1499, %v1515, 0.0
    %v1524 = vsel %vm1492, 1, 0
    %v1525 = vsel %vm1493, 1, 0
    %v1526 = vsel %vm1494, 1, 0
    %v1527 = vsel %vm1495, 1, 0
    %v1528 = vsel %vm1496, 1, 0
    %v1529 = vsel %vm1497, 1, 0
    %v1530 = vsel %vm1498, 1, 0
    %v1531 = vsel %vm1499, 1, 0
    %v1532 = vcvt.s32.f32 %v1524
    %v1533 = vcvt.s32.f32 %v1525
    %v1534 = vcvt.s32.f32 %v1526
    %v1535 = vcvt.s32.f32 %v1527
    %v1536 = vcvt.s32.f32 %v1528
    %v1537 = vcvt.s32.f32 %v1529
    %v1538 = vcvt.s32.f32 %v1530
    %v1539 = vcvt.s32.f32 %v1531
    %v1540 = vadd.f32 %v1484, %v1485
    %v1541 = vadd.f32 %v1540, %v1486
    %v1542 = vadd.f32 %v1541, %v1487
    %v1543 = vadd.f32 %v1542, %v1488
    %v1544 = vadd.f32 %v1543, %v1489
    %v1545 = vadd.f32 %v1544, %v1490
    %v1546 = vadd.f32 %v1545, %v1491
    %v1547 = vadd.f32 %v1423, %v1546
    %v1548 = vadd.f32 %v1516, %v1517
    %v1549 = vadd.f32 %v1548, %v1518
    %v1550 = vadd.f32 %v1549, %v1519
    %v1551 = vadd.f32 %v1550, %v1520
    %v1552 = vadd.f32 %v1551, %v1521
    %v1553 = vadd.f32 %v1552, %v1522
    %v1554 = vadd.f32 %v1553, %v1523
    %v1555 = vadd.f32 %v1431, %v1554
    %v1556 = vadd.f32 %v1532, %v1533
    %v1557 = vadd.f32 %v1556, %v1534
    %v1558 = vadd.f32 %v1557, %v1535
    %v1559 = vadd.f32 %v1558, %v1536
    %v1560 = vadd.f32 %v1559, %v1537
    %v1561 = vadd.f32 %v1560, %v1538
    %v1562 = vadd.f32 %v1561, %v1539
    %v1563 = vadd.f32 %v1439, %v1562
    %v1564 = vld [vmem:[#allocation10] sm:$0xff]
    %v1565 = vadd.f32 %v1564, %v1547
    %1566 = vst [vmem:[#allocation10] sm:$0xff] %v1565
    %s1567 = scalar_lea.vmem [#allocation10], 8
    %v1568 = vld [vmem:[%s1567] sm:$0xff]
    %v1569 = vadd.f32 %v1568, %v1555
    %1570 = vst [vmem:[%s1567] sm:$0xff] %v1569
    %s1571 = scalar_lea.vmem [#allocation10], 16
    %v1572 = vld [vmem:[%s1571] sm:$0xff]
    %v1573 = vadd.f32 %v1572, %v1563
    %1574 = vst [vmem:[%s1571] sm:$0xff] %v1573
    // Predicated region
    $region38: #{tpu_custom_call.1} parent=1 // pred_check
      _
    $region39: #{tpu_custom_call.1} parent=1 // pred_check_branch
      %1576 = sbr.rel (0) target = $region41
    $region40: #{tpu_custom_call.1} parent=1 // pred_region
      %s1578 = ssub.s32 384, 384
      %1579 = vsyncadd [#allocation4], %s1578
      %s1580 = sshll.u32 [#allocation10], 4
      %s1581 = int_to_ptr.vmem [resolvable:$true] %s1580
      %1586 = dma.vmem_to_hbm [thread:$0]  %s1581, 384, %s4, [#allocation4], 128, 128, 8
    $region41: #{tpu_custom_call.1} parent=1 // pred_fallthru
      _
    // Predicated region
    $region42: #{tpu_custom_call.1} parent=1 // pred_check
      _
    $region43: #{tpu_custom_call.1} parent=1 // pred_check_branch
      %1588 = sbr.rel (0) target = $region45
    $region44: #{tpu_custom_call.1} parent=1 // pred_region
      %1589 = dma.done [#allocation4], 384
    $region45: #{tpu_custom_call.1} parent=1 // pred_fallthru
      _
    %1590 = vsyncpa [#allocation3], 1
    %1591 = vsyncpa [#allocation6], 1
    %1592 = vsyncpa [#allocation9], 1
    %1593 = vsyncpa [#allocation4], 1

</llo_original>
